<compile_context>
chip_gen: v5e
topology: v5e:2x2
jax: 0.10.0
libtpu: 0.0.40
codegen_flags: <defaults>
</compile_context>

<pallas_src>
import math
import jax
import jax.numpy as jnp
from jax.experimental import pallas as pl
from jax.experimental.pallas import tpu as pltpu

EMBED_DIM = 128
HIDDEN_DIM = 512
NUM_HEADS = 8
HEAD_DIM = EMBED_DIM // NUM_HEADS
BATCH = 2
SEQ = 8
EPS = 1e-5  # torch nn.LayerNorm default


def encoder_layer_kernel(x_ref, bias_ref,
                         wqkv_ref, bqkv_ref, wo_ref, bo_ref,
                         w1_ref, b1_ref, w2_ref, b2_ref,
                         g1_ref, beta1_ref, g2_ref, beta2_ref,
                         o_ref, ctx_ref):
    x = x_ref[...].astype(jnp.float32)        # (BS, E)
    bias = bias_ref[...]                      # (BS, BS) additive bias (0 / -1e9)

    # --- fused Q/K/V projection (bf16 MXU, f32 accumulate); scale folded into Q ---
    x_bf = x.astype(jnp.bfloat16)
    qkv = jnp.dot(x_bf, wqkv_ref[...],
                  preferred_element_type=jnp.float32) + bqkv_ref[...]   # (BS, 3E)
    q = qkv[:, 0 * EMBED_DIM:1 * EMBED_DIM].astype(jnp.bfloat16)        # 128-lane slices
    k = qkv[:, 1 * EMBED_DIM:2 * EMBED_DIM].astype(jnp.bfloat16)
    v = qkv[:, 2 * EMBED_DIM:3 * EMBED_DIM].astype(jnp.bfloat16)
    kT = k.T                                  # (E, BS): one transpose, hoisted

    # --- multi-head attention; per-head ctx lands in a lane-slice of ctx_ref ---
    for h in range(NUM_HEADS):                # static unrolled loop over heads
        sl = slice(h * HEAD_DIM, (h + 1) * HEAD_DIM)
        scores = jnp.dot(q[:, sl], kT[sl, :],
                         preferred_element_type=jnp.float32) + bias     # (BS, BS)
        m = jnp.max(scores, axis=-1, keepdims=True)
        p = jnp.exp(scores - m)
        p = p / jnp.sum(p, axis=-1, keepdims=True)                      # exact divide
        ctx = jnp.dot(p.astype(jnp.bfloat16), v[:, sl],
                      preferred_element_type=jnp.float32)               # (BS, D)
        ctx_ref[:, sl] = ctx.astype(jnp.bfloat16)

    # single full-width output projection: (BS,128) @ (128,128)
    attn_out = jnp.dot(ctx_ref[...], wo_ref[...],
                       preferred_element_type=jnp.float32) + bo_ref[...]

    # --- residual + LayerNorm1 (dropout == identity in eval mode) ---
    y = x + attn_out
    mu = jnp.mean(y, axis=-1, keepdims=True)
    var = jnp.mean((y - mu) ** 2, axis=-1, keepdims=True)
    y = (y - mu) * jax.lax.rsqrt(var + EPS) * g1_ref[...] + beta1_ref[...]

    # --- FeedForward: relu(y @ W1 + b1) @ W2 + b2 (bf16 MXU, f32 accumulate) ---
    hdn = jnp.maximum(
        jnp.dot(y.astype(jnp.bfloat16), w1_ref[...],
                preferred_element_type=jnp.float32) + b1_ref[...], 0.0)
    ff = jnp.dot(hdn.astype(jnp.bfloat16), w2_ref[...],
                 preferred_element_type=jnp.float32) + b2_ref[...]

    # --- residual + LayerNorm2 ---
    z = y + ff
    mu2 = jnp.mean(z, axis=-1, keepdims=True)
    var2 = jnp.mean((z - mu2) ** 2, axis=-1, keepdims=True)
    z = (z - mu2) * jax.lax.rsqrt(var2 + EPS) * g2_ref[...] + beta2_ref[...]

    o_ref[...] = z.astype(o_ref.dtype)


def encoder_layer(x, mask, params):
    B, S, E = x.shape
    BS = B * S
    x2 = x.reshape(BS, E)

    # Block-diagonal additive bias (built once, outside the kernel):
    #   within batch b: 0 where mask==1, -1e9 where mask==0;  across batches: -1e9.
    mb = jnp.where(mask[:, 0] == 0, -1e9, 0.0).astype(jnp.float32)      # (B, S, S)
    idx = jnp.arange(BS)
    bi, si = idx // S, idx % S
    same_batch = bi[:, None] == bi[None, :]
    within = mb[bi[:, None], si[:, None], si[None, :]]                  # (BS, BS)
    bias_bd = jnp.where(same_batch, within, -1e9).astype(jnp.float32)

    def full_spec(shape):
        return pl.BlockSpec(shape, lambda i, _n=len(shape): (0,) * _n)

    in_specs = [full_spec((BS, E)), full_spec((BS, BS))] \
        + [full_spec(p.shape) for p in params]

    out = pl.pallas_call(
        encoder_layer_kernel,
        out_shape=jax.ShapeDtypeStruct((BS, E), x.dtype),
        grid_spec=pltpu.PrefetchScalarGridSpec(
            num_scalar_prefetch=0,
            grid=(1,),                                   # whole problem in one step
            in_specs=in_specs,
            out_specs=full_spec((BS, E)),
            scratch_shapes=[pltpu.VMEM((BS, E), jnp.bfloat16)],   # per-head ctx slab
        ),
        compiler_params=pltpu.CompilerParams(
            dimension_semantics=("arbitrary",)),
    )(x2, bias_bd, *params)
    return out.reshape(B, S, E)


def reference(x, mask, wq, bq, wk, bk, wv, bv, wo, bo, w1, b1, w2, b2,
              g1, beta1, g2, beta2):
    """Pure-JAX f32 mirror of the PyTorch module (eval mode)."""
    B, S, E = x.shape

    def ln(t, g, b):
        mu = jnp.mean(t, -1, keepdims=True)
        var = jnp.mean((t - mu) ** 2, -1, keepdims=True)
        return (t - mu) * jax.lax.rsqrt(var + EPS) * g + b

    def split(t):
        return t.reshape(B, S, NUM_HEADS, HEAD_DIM).transpose(0, 2, 1, 3)

    q, k, v = x @ wq + bq, x @ wk + bk, x @ wv + bv
    qh, kh, vh = split(q), split(k), split(v)
    scores = jnp.einsum('bhqd,bhkd->bhqk', qh, kh) / math.sqrt(HEAD_DIM)
    scores = jnp.where(mask == 0, -1e9, scores)
    p = jax.nn.softmax(scores, axis=-1)
    ctx = jnp.einsum('bhqk,bhkd->bhqd', p, vh).transpose(0, 2, 1, 3).reshape(B, S, E)
    attn = ctx @ wo + bo
    y = ln(x + attn, g1, beta1)
    ff = jnp.maximum(y @ w1 + b1, 0.0) @ w2 + b2
    return ln(y + ff, g2, beta2)


if __name__ == "__main__":
    key = jax.random.PRNGKey(0)
    ks = jax.random.split(key, 12)

    def init(k, shape, scale=0.02):
        return jax.random.normal(k, shape, jnp.float32) * scale

    # Attention projection weights, stored as (in, out) (torch W.T) so kernel does x @ W.
    wq = init(ks[0], (EMBED_DIM, EMBED_DIM)); bq = init(ks[1], (1, EMBED_DIM))
    wk = init(ks[2], (EMBED_DIM, EMBED_DIM)); bk = init(ks[3], (1, EMBED_DIM))
    wv = init(ks[4], (EMBED_DIM, EMBED_DIM)); bv = init(ks[5], (1, EMBED_DIM))
    wo = init(ks[6], (EMBED_DIM, EMBED_DIM)); bo = init(ks[7], (1, EMBED_DIM))
    # FeedForward weights.
    w1 = init(ks[8], (EMBED_DIM, HIDDEN_DIM)); b1 = init(ks[9], (1, HIDDEN_DIM))
    w2 = init(ks[10], (HIDDEN_DIM, EMBED_DIM)); b2 = init(ks[11], (1, EMBED_DIM))
    # LayerNorm affine params (torch defaults: weight=1, bias=0).
    g1 = jnp.ones((1, EMBED_DIM), jnp.float32); beta1 = jnp.zeros((1, EMBED_DIM), jnp.float32)
    g2 = jnp.ones((1, EMBED_DIM), jnp.float32); beta2 = jnp.zeros((1, EMBED_DIM), jnp.float32)

    # Fuse Q/K/V into one (E, 3E) matmul; fold softmax scale into the Q columns;
    # store matmul weights in bf16 (biases / LN params stay f32).
    scale = 1.0 / math.sqrt(HEAD_DIM)
    wqkv = jnp.concatenate([wq * scale, wk, wv], axis=1).astype(jnp.bfloat16)  # (E, 3E)
    bqkv = jnp.concatenate([bq * scale, bk, bv], axis=1)                       # (1, 3E) f32

    params = (wqkv, bqkv,
              wo.astype(jnp.bfloat16), bo,
              w1.astype(jnp.bfloat16), b1,
              w2.astype(jnp.bfloat16), b2,
              g1, beta1, g2, beta2)

    xkey = jax.random.PRNGKey(42)
    x = jax.random.normal(xkey, (BATCH, SEQ, EMBED_DIM), jnp.float32)
    # Causal mask, shape (B, 1, S, S); zeros get -1e9 in attention.
    mask = jnp.broadcast_to(
        jnp.tril(jnp.ones((SEQ, SEQ), jnp.int32))[None, None],
        (BATCH, 1, SEQ, SEQ)).astype(jnp.int32)

    out = encoder_layer(x, mask, params)
    jax.block_until_ready(out)

    assert out.shape == (BATCH, SEQ, EMBED_DIM)
    assert bool(jnp.all(jnp.isfinite(out)))

    # Loose-tolerance check against a pure-JAX f32 reference (kernel uses bf16 matmuls).
    ref = reference(x, mask, wq, bq, wk, bk, wv, bv, wo, bo, w1, b1, w2, b2,
                    g1, beta1, g2, beta2)
    assert float(jnp.max(jnp.abs(out - ref))) < 0.15

    print("KERNEL_OK")
</pallas_src>

<mosaic_0001>
module attributes {stable_mosaic.version = 11 : i64} {
  func.func @encoder_layer_kernel(%arg0: i32, %arg1: memref<16x128xf32, #tpu.memory_space<vmem>>, %arg2: memref<16x16xf32, #tpu.memory_space<vmem>>, %arg3: memref<128x384xbf16, #tpu.memory_space<vmem>>, %arg4: memref<1x384xf32, #tpu.memory_space<vmem>>, %arg5: memref<128x128xbf16, #tpu.memory_space<vmem>>, %arg6: memref<1x128xf32, #tpu.memory_space<vmem>>, %arg7: memref<128x512xbf16, #tpu.memory_space<vmem>>, %arg8: memref<1x512xf32, #tpu.memory_space<vmem>>, %arg9: memref<512x128xbf16, #tpu.memory_space<vmem>>, %arg10: memref<1x128xf32, #tpu.memory_space<vmem>>, %arg11: memref<1x128xf32, #tpu.memory_space<vmem>>, %arg12: memref<1x128xf32, #tpu.memory_space<vmem>>, %arg13: memref<1x128xf32, #tpu.memory_space<vmem>>, %arg14: memref<1x128xf32, #tpu.memory_space<vmem>>, %arg15: memref<16x128xf32, #tpu.memory_space<vmem>>, %arg16: memref<16x128xbf16, #tpu.memory_space<vmem>>) attributes {dimension_semantics = [#tpu.dimension_semantics<arbitrary>], iteration_bounds = array<i64: 1>, scalar_prefetch = 0 : i64, scratch_operands = 1 : i64, tpu.core_type = #tpu.core_type<tc>, window_params = [{pipeline_mode = #tpu.pipeline_mode<synchronous>, transform_indices = @transform_0, window_bounds = array<i64: 16, 128>}, {pipeline_mode = #tpu.pipeline_mode<synchronous>, transform_indices = @transform_1, window_bounds = array<i64: 16, 16>}, {pipeline_mode = #tpu.pipeline_mode<synchronous>, transform_indices = @transform_2, window_bounds = array<i64: 128, 384>}, {pipeline_mode = #tpu.pipeline_mode<synchronous>, transform_indices = @transform_3, window_bounds = array<i64: 1, 384>}, {pipeline_mode = #tpu.pipeline_mode<synchronous>, transform_indices = @transform_4, window_bounds = array<i64: 128, 128>}, {pipeline_mode = #tpu.pipeline_mode<synchronous>, transform_indices = @transform_5, window_bounds = array<i64: 1, 128>}, {pipeline_mode = #tpu.pipeline_mode<synchronous>, transform_indices = @transform_6, window_bounds = array<i64: 128, 512>}, {pipeline_mode = #tpu.pipeline_mode<synchronous>, transform_indices = @transform_7, window_bounds = array<i64: 1, 512>}, {pipeline_mode = #tpu.pipeline_mode<synchronous>, transform_indices = @transform_8, window_bounds = array<i64: 512, 128>}, {pipeline_mode = #tpu.pipeline_mode<synchronous>, transform_indices = @transform_9, window_bounds = array<i64: 1, 128>}, {pipeline_mode = #tpu.pipeline_mode<synchronous>, transform_indices = @transform_10, window_bounds = array<i64: 1, 128>}, {pipeline_mode = #tpu.pipeline_mode<synchronous>, transform_indices = @transform_11, window_bounds = array<i64: 1, 128>}, {pipeline_mode = #tpu.pipeline_mode<synchronous>, transform_indices = @transform_12, window_bounds = array<i64: 1, 128>}, {pipeline_mode = #tpu.pipeline_mode<synchronous>, transform_indices = @transform_13, window_bounds = array<i64: 1, 128>}, {pipeline_mode = #tpu.pipeline_mode<synchronous>, transform_indices = @transform_14, window_bounds = array<i64: 16, 128>}]} {
    %c0 = arith.constant 0 : index
    %c0_0 = arith.constant 0 : index
    %0 = vector.load %arg1[%c0, %c0_0] : memref<16x128xf32, #tpu.memory_space<vmem>>, vector<16x128xf32>
    %c0_1 = arith.constant 0 : index
    %c0_2 = arith.constant 0 : index
    %1 = vector.load %arg2[%c0_1, %c0_2] : memref<16x16xf32, #tpu.memory_space<vmem>>, vector<16x16xf32>
    %2 = arith.truncf %0 : vector<16x128xf32> to vector<16x128xbf16>
    %c0_3 = arith.constant 0 : index
    %c0_4 = arith.constant 0 : index
    %3 = vector.load %arg3[%c0_3, %c0_4] : memref<128x384xbf16, #tpu.memory_space<vmem>>, vector<128x384xbf16>
    %cst = arith.constant dense<0.000000e+00> : vector<16x384xf32>
    %4 = tpu.matmul %2, %3, %cst {dimension_numbers = #tpu.dot_dimension_numbers<[1], [0], [0], [1], [0, 0, 1, 1], [], []>} : vector<16x128xbf16>, vector<128x384xbf16>, vector<16x384xf32> -> vector<16x384xf32>
    %c0_5 = arith.constant 0 : index
    %c0_6 = arith.constant 0 : index
    %5 = vector.load %arg4[%c0_5, %c0_6] : memref<1x384xf32, #tpu.memory_space<vmem>>, vector<1x384xf32>
    %6 = vector.broadcast %5 : vector<1x384xf32> to vector<16x384xf32>
    %7 = arith.addf %4, %6 : vector<16x384xf32>
    %8 = vector.extract_strided_slice %7 {offsets = [0, 0], sizes = [16, 128], strides = [1, 1]} : vector<16x384xf32> to vector<16x128xf32>
    %9 = arith.truncf %8 : vector<16x128xf32> to vector<16x128xbf16>
    %10 = vector.extract_strided_slice %7 {offsets = [0, 128], sizes = [16, 128], strides = [1, 1]} : vector<16x384xf32> to vector<16x128xf32>
    %11 = arith.truncf %10 : vector<16x128xf32> to vector<16x128xbf16>
    %12 = vector.extract_strided_slice %7 {offsets = [0, 256], sizes = [16, 128], strides = [1, 1]} : vector<16x384xf32> to vector<16x128xf32>
    %13 = arith.truncf %12 : vector<16x128xf32> to vector<16x128xbf16>
    %14 = tpu.transpose %11, [1, 0] : vector<16x128xbf16> -> vector<128x16xbf16>
    %15 = vector.extract_strided_slice %9 {offsets = [0, 0], sizes = [16, 16], strides = [1, 1]} : vector<16x128xbf16> to vector<16x16xbf16>
    %16 = vector.extract_strided_slice %14 {offsets = [0, 0], sizes = [16, 16], strides = [1, 1]} : vector<128x16xbf16> to vector<16x16xbf16>
    %cst_7 = arith.constant dense<0.000000e+00> : vector<16x16xf32>
    %17 = tpu.matmul %15, %16, %cst_7 {dimension_numbers = #tpu.dot_dimension_numbers<[1], [0], [0], [1], [0, 0, 1, 1], [], []>} : vector<16x16xbf16>, vector<16x16xbf16>, vector<16x16xf32> -> vector<16x16xf32>
    %18 = arith.addf %17, %1 : vector<16x16xf32>
    %cst_8 = arith.constant dense<0xFF800000> : vector<16xf32>
    %19 = vector.multi_reduction <maximumf>, %18, %cst_8 [1] : vector<16x16xf32> to vector<16xf32>
    %20 = vector.shape_cast %19 : vector<16xf32> to vector<16x1xf32>
    %21 = vector.broadcast %20 : vector<16x1xf32> to vector<16x16xf32>
    %22 = arith.subf %18, %21 : vector<16x16xf32>
    %23 = math.exp %22 : vector<16x16xf32>
    %cst_9 = arith.constant dense<0.000000e+00> : vector<16xf32>
    %24 = vector.multi_reduction <add>, %23, %cst_9 [1] : vector<16x16xf32> to vector<16xf32>
    %25 = vector.shape_cast %24 : vector<16xf32> to vector<16x1xf32>
    %26 = vector.broadcast %25 : vector<16x1xf32> to vector<16x16xf32>
    %27 = arith.divf %23, %26 : vector<16x16xf32>
    %28 = arith.truncf %27 : vector<16x16xf32> to vector<16x16xbf16>
    %29 = vector.extract_strided_slice %13 {offsets = [0, 0], sizes = [16, 16], strides = [1, 1]} : vector<16x128xbf16> to vector<16x16xbf16>
    %cst_10 = arith.constant dense<0.000000e+00> : vector<16x16xf32>
    %30 = tpu.matmul %28, %29, %cst_10 {dimension_numbers = #tpu.dot_dimension_numbers<[1], [0], [0], [1], [0, 0, 1, 1], [], []>} : vector<16x16xbf16>, vector<16x16xbf16>, vector<16x16xf32> -> vector<16x16xf32>
    %31 = arith.truncf %30 : vector<16x16xf32> to vector<16x16xbf16>
    %c0_11 = arith.constant 0 : index
    %c0_12 = arith.constant 0 : index
    %32 = vector.load %arg16[%c0_11, %c0_12] : memref<16x128xbf16, #tpu.memory_space<vmem>>, vector<16x16xbf16>
    tpu.vector_store %arg16[%c0_11, %c0_12], %31 {strides = array<i32>} : memref<16x128xbf16, #tpu.memory_space<vmem>>, vector<16x16xbf16>,
    %33 = vector.extract_strided_slice %9 {offsets = [0, 16], sizes = [16, 16], strides = [1, 1]} : vector<16x128xbf16> to vector<16x16xbf16>
    %34 = vector.extract_strided_slice %14 {offsets = [16, 0], sizes = [16, 16], strides = [1, 1]} : vector<128x16xbf16> to vector<16x16xbf16>
    %cst_13 = arith.constant dense<0.000000e+00> : vector<16x16xf32>
    %35 = tpu.matmul %33, %34, %cst_13 {dimension_numbers = #tpu.dot_dimension_numbers<[1], [0], [0], [1], [0, 0, 1, 1], [], []>} : vector<16x16xbf16>, vector<16x16xbf16>, vector<16x16xf32> -> vector<16x16xf32>
    %36 = arith.addf %35, %1 : vector<16x16xf32>
    %cst_14 = arith.constant dense<0xFF800000> : vector<16xf32>
    %37 = vector.multi_reduction <maximumf>, %36, %cst_14 [1] : vector<16x16xf32> to vector<16xf32>
    %38 = vector.shape_cast %37 : vector<16xf32> to vector<16x1xf32>
    %39 = vector.broadcast %38 : vector<16x1xf32> to vector<16x16xf32>
    %40 = arith.subf %36, %39 : vector<16x16xf32>
    %41 = math.exp %40 : vector<16x16xf32>
    %cst_15 = arith.constant dense<0.000000e+00> : vector<16xf32>
    %42 = vector.multi_reduction <add>, %41, %cst_15 [1] : vector<16x16xf32> to vector<16xf32>
    %43 = vector.shape_cast %42 : vector<16xf32> to vector<16x1xf32>
    %44 = vector.broadcast %43 : vector<16x1xf32> to vector<16x16xf32>
    %45 = arith.divf %41, %44 : vector<16x16xf32>
    %46 = arith.truncf %45 : vector<16x16xf32> to vector<16x16xbf16>
    %47 = vector.extract_strided_slice %13 {offsets = [0, 16], sizes = [16, 16], strides = [1, 1]} : vector<16x128xbf16> to vector<16x16xbf16>
    %cst_16 = arith.constant dense<0.000000e+00> : vector<16x16xf32>
    %48 = tpu.matmul %46, %47, %cst_16 {dimension_numbers = #tpu.dot_dimension_numbers<[1], [0], [0], [1], [0, 0, 1, 1], [], []>} : vector<16x16xbf16>, vector<16x16xbf16>, vector<16x16xf32> -> vector<16x16xf32>
    %49 = arith.truncf %48 : vector<16x16xf32> to vector<16x16xbf16>
    %c0_17 = arith.constant 0 : index
    %c16 = arith.constant 16 : index
    %50 = vector.load %arg16[%c0_17, %c16] : memref<16x128xbf16, #tpu.memory_space<vmem>>, vector<16x16xbf16>
    tpu.vector_store %arg16[%c0_17, %c16], %49 {strides = array<i32>} : memref<16x128xbf16, #tpu.memory_space<vmem>>, vector<16x16xbf16>,
    %51 = vector.extract_strided_slice %9 {offsets = [0, 32], sizes = [16, 16], strides = [1, 1]} : vector<16x128xbf16> to vector<16x16xbf16>
    %52 = vector.extract_strided_slice %14 {offsets = [32, 0], sizes = [16, 16], strides = [1, 1]} : vector<128x16xbf16> to vector<16x16xbf16>
    %cst_18 = arith.constant dense<0.000000e+00> : vector<16x16xf32>
    %53 = tpu.matmul %51, %52, %cst_18 {dimension_numbers = #tpu.dot_dimension_numbers<[1], [0], [0], [1], [0, 0, 1, 1], [], []>} : vector<16x16xbf16>, vector<16x16xbf16>, vector<16x16xf32> -> vector<16x16xf32>
    %54 = arith.addf %53, %1 : vector<16x16xf32>
    %cst_19 = arith.constant dense<0xFF800000> : vector<16xf32>
    %55 = vector.multi_reduction <maximumf>, %54, %cst_19 [1] : vector<16x16xf32> to vector<16xf32>
    %56 = vector.shape_cast %55 : vector<16xf32> to vector<16x1xf32>
    %57 = vector.broadcast %56 : vector<16x1xf32> to vector<16x16xf32>
    %58 = arith.subf %54, %57 : vector<16x16xf32>
    %59 = math.exp %58 : vector<16x16xf32>
    %cst_20 = arith.constant dense<0.000000e+00> : vector<16xf32>
    %60 = vector.multi_reduction <add>, %59, %cst_20 [1] : vector<16x16xf32> to vector<16xf32>
    %61 = vector.shape_cast %60 : vector<16xf32> to vector<16x1xf32>
    %62 = vector.broadcast %61 : vector<16x1xf32> to vector<16x16xf32>
    %63 = arith.divf %59, %62 : vector<16x16xf32>
    %64 = arith.truncf %63 : vector<16x16xf32> to vector<16x16xbf16>
    %65 = vector.extract_strided_slice %13 {offsets = [0, 32], sizes = [16, 16], strides = [1, 1]} : vector<16x128xbf16> to vector<16x16xbf16>
    %cst_21 = arith.constant dense<0.000000e+00> : vector<16x16xf32>
    %66 = tpu.matmul %64, %65, %cst_21 {dimension_numbers = #tpu.dot_dimension_numbers<[1], [0], [0], [1], [0, 0, 1, 1], [], []>} : vector<16x16xbf16>, vector<16x16xbf16>, vector<16x16xf32> -> vector<16x16xf32>
    %67 = arith.truncf %66 : vector<16x16xf32> to vector<16x16xbf16>
    %c0_22 = arith.constant 0 : index
    %c32 = arith.constant 32 : index
    %68 = vector.load %arg16[%c0_22, %c32] : memref<16x128xbf16, #tpu.memory_space<vmem>>, vector<16x16xbf16>
    tpu.vector_store %arg16[%c0_22, %c32], %67 {strides = array<i32>} : memref<16x128xbf16, #tpu.memory_space<vmem>>, vector<16x16xbf16>,
    %69 = vector.extract_strided_slice %9 {offsets = [0, 48], sizes = [16, 16], strides = [1, 1]} : vector<16x128xbf16> to vector<16x16xbf16>
    %70 = vector.extract_strided_slice %14 {offsets = [48, 0], sizes = [16, 16], strides = [1, 1]} : vector<128x16xbf16> to vector<16x16xbf16>
    %cst_23 = arith.constant dense<0.000000e+00> : vector<16x16xf32>
    %71 = tpu.matmul %69, %70, %cst_23 {dimension_numbers = #tpu.dot_dimension_numbers<[1], [0], [0], [1], [0, 0, 1, 1], [], []>} : vector<16x16xbf16>, vector<16x16xbf16>, vector<16x16xf32> -> vector<16x16xf32>
    %72 = arith.addf %71, %1 : vector<16x16xf32>
    %cst_24 = arith.constant dense<0xFF800000> : vector<16xf32>
    %73 = vector.multi_reduction <maximumf>, %72, %cst_24 [1] : vector<16x16xf32> to vector<16xf32>
    %74 = vector.shape_cast %73 : vector<16xf32> to vector<16x1xf32>
    %75 = vector.broadcast %74 : vector<16x1xf32> to vector<16x16xf32>
    %76 = arith.subf %72, %75 : vector<16x16xf32>
    %77 = math.exp %76 : vector<16x16xf32>
    %cst_25 = arith.constant dense<0.000000e+00> : vector<16xf32>
    %78 = vector.multi_reduction <add>, %77, %cst_25 [1] : vector<16x16xf32> to vector<16xf32>
    %79 = vector.shape_cast %78 : vector<16xf32> to vector<16x1xf32>
    %80 = vector.broadcast %79 : vector<16x1xf32> to vector<16x16xf32>
    %81 = arith.divf %77, %80 : vector<16x16xf32>
    %82 = arith.truncf %81 : vector<16x16xf32> to vector<16x16xbf16>
    %83 = vector.extract_strided_slice %13 {offsets = [0, 48], sizes = [16, 16], strides = [1, 1]} : vector<16x128xbf16> to vector<16x16xbf16>
    %cst_26 = arith.constant dense<0.000000e+00> : vector<16x16xf32>
    %84 = tpu.matmul %82, %83, %cst_26 {dimension_numbers = #tpu.dot_dimension_numbers<[1], [0], [0], [1], [0, 0, 1, 1], [], []>} : vector<16x16xbf16>, vector<16x16xbf16>, vector<16x16xf32> -> vector<16x16xf32>
    %85 = arith.truncf %84 : vector<16x16xf32> to vector<16x16xbf16>
    %c0_27 = arith.constant 0 : index
    %c48 = arith.constant 48 : index
    %86 = vector.load %arg16[%c0_27, %c48] : memref<16x128xbf16, #tpu.memory_space<vmem>>, vector<16x16xbf16>
    tpu.vector_store %arg16[%c0_27, %c48], %85 {strides = array<i32>} : memref<16x128xbf16, #tpu.memory_space<vmem>>, vector<16x16xbf16>,
    %87 = vector.extract_strided_slice %9 {offsets = [0, 64], sizes = [16, 16], strides = [1, 1]} : vector<16x128xbf16> to vector<16x16xbf16>
    %88 = vector.extract_strided_slice %14 {offsets = [64, 0], sizes = [16, 16], strides = [1, 1]} : vector<128x16xbf16> to vector<16x16xbf16>
    %cst_28 = arith.constant dense<0.000000e+00> : vector<16x16xf32>
    %89 = tpu.matmul %87, %88, %cst_28 {dimension_numbers = #tpu.dot_dimension_numbers<[1], [0], [0], [1], [0, 0, 1, 1], [], []>} : vector<16x16xbf16>, vector<16x16xbf16>, vector<16x16xf32> -> vector<16x16xf32>
    %90 = arith.addf %89, %1 : vector<16x16xf32>
    %cst_29 = arith.constant dense<0xFF800000> : vector<16xf32>
    %91 = vector.multi_reduction <maximumf>, %90, %cst_29 [1] : vector<16x16xf32> to vector<16xf32>
    %92 = vector.shape_cast %91 : vector<16xf32> to vector<16x1xf32>
    %93 = vector.broadcast %92 : vector<16x1xf32> to vector<16x16xf32>
    %94 = arith.subf %90, %93 : vector<16x16xf32>
    %95 = math.exp %94 : vector<16x16xf32>
    %cst_30 = arith.constant dense<0.000000e+00> : vector<16xf32>
    %96 = vector.multi_reduction <add>, %95, %cst_30 [1] : vector<16x16xf32> to vector<16xf32>
    %97 = vector.shape_cast %96 : vector<16xf32> to vector<16x1xf32>
    %98 = vector.broadcast %97 : vector<16x1xf32> to vector<16x16xf32>
    %99 = arith.divf %95, %98 : vector<16x16xf32>
    %100 = arith.truncf %99 : vector<16x16xf32> to vector<16x16xbf16>
    %101 = vector.extract_strided_slice %13 {offsets = [0, 64], sizes = [16, 16], strides = [1, 1]} : vector<16x128xbf16> to vector<16x16xbf16>
    %cst_31 = arith.constant dense<0.000000e+00> : vector<16x16xf32>
    %102 = tpu.matmul %100, %101, %cst_31 {dimension_numbers = #tpu.dot_dimension_numbers<[1], [0], [0], [1], [0, 0, 1, 1], [], []>} : vector<16x16xbf16>, vector<16x16xbf16>, vector<16x16xf32> -> vector<16x16xf32>
    %103 = arith.truncf %102 : vector<16x16xf32> to vector<16x16xbf16>
    %c0_32 = arith.constant 0 : index
    %c64 = arith.constant 64 : index
    %104 = vector.load %arg16[%c0_32, %c64] : memref<16x128xbf16, #tpu.memory_space<vmem>>, vector<16x16xbf16>
    tpu.vector_store %arg16[%c0_32, %c64], %103 {strides = array<i32>} : memref<16x128xbf16, #tpu.memory_space<vmem>>, vector<16x16xbf16>,
    %105 = vector.extract_strided_slice %9 {offsets = [0, 80], sizes = [16, 16], strides = [1, 1]} : vector<16x128xbf16> to vector<16x16xbf16>
    %106 = vector.extract_strided_slice %14 {offsets = [80, 0], sizes = [16, 16], strides = [1, 1]} : vector<128x16xbf16> to vector<16x16xbf16>
    %cst_33 = arith.constant dense<0.000000e+00> : vector<16x16xf32>
    %107 = tpu.matmul %105, %106, %cst_33 {dimension_numbers = #tpu.dot_dimension_numbers<[1], [0], [0], [1], [0, 0, 1, 1], [], []>} : vector<16x16xbf16>, vector<16x16xbf16>, vector<16x16xf32> -> vector<16x16xf32>
    %108 = arith.addf %107, %1 : vector<16x16xf32>
    %cst_34 = arith.constant dense<0xFF800000> : vector<16xf32>
    %109 = vector.multi_reduction <maximumf>, %108, %cst_34 [1] : vector<16x16xf32> to vector<16xf32>
    %110 = vector.shape_cast %109 : vector<16xf32> to vector<16x1xf32>
    %111 = vector.broadcast %110 : vector<16x1xf32> to vector<16x16xf32>
    %112 = arith.subf %108, %111 : vector<16x16xf32>
    %113 = math.exp %112 : vector<16x16xf32>
    %cst_35 = arith.constant dense<0.000000e+00> : vector<16xf32>
    %114 = vector.multi_reduction <add>, %113, %cst_35 [1] : vector<16x16xf32> to vector<16xf32>
    %115 = vector.shape_cast %114 : vector<16xf32> to vector<16x1xf32>
    %116 = vector.broadcast %115 : vector<16x1xf32> to vector<16x16xf32>
    %117 = arith.divf %113, %116 : vector<16x16xf32>
    %118 = arith.truncf %117 : vector<16x16xf32> to vector<16x16xbf16>
    %119 = vector.extract_strided_slice %13 {offsets = [0, 80], sizes = [16, 16], strides = [1, 1]} : vector<16x128xbf16> to vector<16x16xbf16>
    %cst_36 = arith.constant dense<0.000000e+00> : vector<16x16xf32>
    %120 = tpu.matmul %118, %119, %cst_36 {dimension_numbers = #tpu.dot_dimension_numbers<[1], [0], [0], [1], [0, 0, 1, 1], [], []>} : vector<16x16xbf16>, vector<16x16xbf16>, vector<16x16xf32> -> vector<16x16xf32>
    %121 = arith.truncf %120 : vector<16x16xf32> to vector<16x16xbf16>
    %c0_37 = arith.constant 0 : index
    %c80 = arith.constant 80 : index
    %122 = vector.load %arg16[%c0_37, %c80] : memref<16x128xbf16, #tpu.memory_space<vmem>>, vector<16x16xbf16>
    tpu.vector_store %arg16[%c0_37, %c80], %121 {strides = array<i32>} : memref<16x128xbf16, #tpu.memory_space<vmem>>, vector<16x16xbf16>,
    %123 = vector.extract_strided_slice %9 {offsets = [0, 96], sizes = [16, 16], strides = [1, 1]} : vector<16x128xbf16> to vector<16x16xbf16>
    %124 = vector.extract_strided_slice %14 {offsets = [96, 0], sizes = [16, 16], strides = [1, 1]} : vector<128x16xbf16> to vector<16x16xbf16>
    %cst_38 = arith.constant dense<0.000000e+00> : vector<16x16xf32>
    %125 = tpu.matmul %123, %124, %cst_38 {dimension_numbers = #tpu.dot_dimension_numbers<[1], [0], [0], [1], [0, 0, 1, 1], [], []>} : vector<16x16xbf16>, vector<16x16xbf16>, vector<16x16xf32> -> vector<16x16xf32>
    %126 = arith.addf %125, %1 : vector<16x16xf32>
    %cst_39 = arith.constant dense<0xFF800000> : vector<16xf32>
    %127 = vector.multi_reduction <maximumf>, %126, %cst_39 [1] : vector<16x16xf32> to vector<16xf32>
    %128 = vector.shape_cast %127 : vector<16xf32> to vector<16x1xf32>
    %129 = vector.broadcast %128 : vector<16x1xf32> to vector<16x16xf32>
    %130 = arith.subf %126, %129 : vector<16x16xf32>
    %131 = math.exp %130 : vector<16x16xf32>
    %cst_40 = arith.constant dense<0.000000e+00> : vector<16xf32>
    %132 = vector.multi_reduction <add>, %131, %cst_40 [1] : vector<16x16xf32> to vector<16xf32>
    %133 = vector.shape_cast %132 : vector<16xf32> to vector<16x1xf32>
    %134 = vector.broadcast %133 : vector<16x1xf32> to vector<16x16xf32>
    %135 = arith.divf %131, %134 : vector<16x16xf32>
    %136 = arith.truncf %135 : vector<16x16xf32> to vector<16x16xbf16>
    %137 = vector.extract_strided_slice %13 {offsets = [0, 96], sizes = [16, 16], strides = [1, 1]} : vector<16x128xbf16> to vector<16x16xbf16>
    %cst_41 = arith.constant dense<0.000000e+00> : vector<16x16xf32>
    %138 = tpu.matmul %136, %137, %cst_41 {dimension_numbers = #tpu.dot_dimension_numbers<[1], [0], [0], [1], [0, 0, 1, 1], [], []>} : vector<16x16xbf16>, vector<16x16xbf16>, vector<16x16xf32> -> vector<16x16xf32>
    %139 = arith.truncf %138 : vector<16x16xf32> to vector<16x16xbf16>
    %c0_42 = arith.constant 0 : index
    %c96 = arith.constant 96 : index
    %140 = vector.load %arg16[%c0_42, %c96] : memref<16x128xbf16, #tpu.memory_space<vmem>>, vector<16x16xbf16>
    tpu.vector_store %arg16[%c0_42, %c96], %139 {strides = array<i32>} : memref<16x128xbf16, #tpu.memory_space<vmem>>, vector<16x16xbf16>,
    %141 = vector.extract_strided_slice %9 {offsets = [0, 112], sizes = [16, 16], strides = [1, 1]} : vector<16x128xbf16> to vector<16x16xbf16>
    %142 = vector.extract_strided_slice %14 {offsets = [112, 0], sizes = [16, 16], strides = [1, 1]} : vector<128x16xbf16> to vector<16x16xbf16>
    %cst_43 = arith.constant dense<0.000000e+00> : vector<16x16xf32>
    %143 = tpu.matmul %141, %142, %cst_43 {dimension_numbers = #tpu.dot_dimension_numbers<[1], [0], [0], [1], [0, 0, 1, 1], [], []>} : vector<16x16xbf16>, vector<16x16xbf16>, vector<16x16xf32> -> vector<16x16xf32>
    %144 = arith.addf %143, %1 : vector<16x16xf32>
    %cst_44 = arith.constant dense<0xFF800000> : vector<16xf32>
    %145 = vector.multi_reduction <maximumf>, %144, %cst_44 [1] : vector<16x16xf32> to vector<16xf32>
    %146 = vector.shape_cast %145 : vector<16xf32> to vector<16x1xf32>
    %147 = vector.broadcast %146 : vector<16x1xf32> to vector<16x16xf32>
    %148 = arith.subf %144, %147 : vector<16x16xf32>
    %149 = math.exp %148 : vector<16x16xf32>
    %cst_45 = arith.constant dense<0.000000e+00> : vector<16xf32>
    %150 = vector.multi_reduction <add>, %149, %cst_45 [1] : vector<16x16xf32> to vector<16xf32>
    %151 = vector.shape_cast %150 : vector<16xf32> to vector<16x1xf32>
    %152 = vector.broadcast %151 : vector<16x1xf32> to vector<16x16xf32>
    %153 = arith.divf %149, %152 : vector<16x16xf32>
    %154 = arith.truncf %153 : vector<16x16xf32> to vector<16x16xbf16>
    %155 = vector.extract_strided_slice %13 {offsets = [0, 112], sizes = [16, 16], strides = [1, 1]} : vector<16x128xbf16> to vector<16x16xbf16>
    %cst_46 = arith.constant dense<0.000000e+00> : vector<16x16xf32>
    %156 = tpu.matmul %154, %155, %cst_46 {dimension_numbers = #tpu.dot_dimension_numbers<[1], [0], [0], [1], [0, 0, 1, 1], [], []>} : vector<16x16xbf16>, vector<16x16xbf16>, vector<16x16xf32> -> vector<16x16xf32>
    %157 = arith.truncf %156 : vector<16x16xf32> to vector<16x16xbf16>
    %c0_47 = arith.constant 0 : index
    %c112 = arith.constant 112 : index
    %158 = vector.load %arg16[%c0_47, %c112] : memref<16x128xbf16, #tpu.memory_space<vmem>>, vector<16x16xbf16>
    tpu.vector_store %arg16[%c0_47, %c112], %157 {strides = array<i32>} : memref<16x128xbf16, #tpu.memory_space<vmem>>, vector<16x16xbf16>,
    %c0_48 = arith.constant 0 : index
    %c0_49 = arith.constant 0 : index
    %159 = vector.load %arg16[%c0_48, %c0_49] : memref<16x128xbf16, #tpu.memory_space<vmem>>, vector<16x128xbf16>
    %c0_50 = arith.constant 0 : index
    %c0_51 = arith.constant 0 : index
    %160 = vector.load %arg5[%c0_50, %c0_51] : memref<128x128xbf16, #tpu.memory_space<vmem>>, vector<128x128xbf16>
    %cst_52 = arith.constant dense<0.000000e+00> : vector<16x128xf32>
    %161 = tpu.matmul %159, %160, %cst_52 {dimension_numbers = #tpu.dot_dimension_numbers<[1], [0], [0], [1], [0, 0, 1, 1], [], []>} : vector<16x128xbf16>, vector<128x128xbf16>, vector<16x128xf32> -> vector<16x128xf32>
    %c0_53 = arith.constant 0 : index
    %c0_54 = arith.constant 0 : index
    %162 = vector.load %arg6[%c0_53, %c0_54] : memref<1x128xf32, #tpu.memory_space<vmem>>, vector<1x128xf32>
    %163 = vector.broadcast %162 : vector<1x128xf32> to vector<16x128xf32>
    %164 = arith.addf %161, %163 : vector<16x128xf32>
    %165 = arith.addf %0, %164 : vector<16x128xf32>
    %cst_55 = arith.constant dense<0.000000e+00> : vector<16xf32>
    %166 = vector.multi_reduction <add>, %165, %cst_55 [1] : vector<16x128xf32> to vector<16xf32>
    %167 = vector.shape_cast %166 : vector<16xf32> to vector<16x1xf32>
    %cst_56 = arith.constant 1.280000e+02 : f32
    %168 = vector.broadcast %cst_56 : f32 to vector<16x1xf32>
    %169 = arith.divf %167, %168 : vector<16x1xf32>
    %170 = vector.broadcast %169 : vector<16x1xf32> to vector<16x128xf32>
    %171 = arith.subf %165, %170 : vector<16x128xf32>
    %172 = arith.mulf %171, %171 : vector<16x128xf32>
    %cst_57 = arith.constant dense<0.000000e+00> : vector<16xf32>
    %173 = vector.multi_reduction <add>, %172, %cst_57 [1] : vector<16x128xf32> to vector<16xf32>
    %174 = vector.shape_cast %173 : vector<16xf32> to vector<16x1xf32>
    %cst_58 = arith.constant 1.280000e+02 : f32
    %175 = vector.broadcast %cst_58 : f32 to vector<16x1xf32>
    %176 = arith.divf %174, %175 : vector<16x1xf32>
    %177 = vector.broadcast %169 : vector<16x1xf32> to vector<16x128xf32>
    %178 = arith.subf %165, %177 : vector<16x128xf32>
    %cst_59 = arith.constant 9.99999974E-6 : f32
    %179 = vector.broadcast %cst_59 : f32 to vector<16x1xf32>
    %180 = arith.addf %176, %179 : vector<16x1xf32>
    %181 = math.rsqrt %180 : vector<16x1xf32>
    %182 = vector.broadcast %181 : vector<16x1xf32> to vector<16x128xf32>
    %183 = arith.mulf %178, %182 : vector<16x128xf32>
    %c0_60 = arith.constant 0 : index
    %c0_61 = arith.constant 0 : index
    %184 = vector.load %arg11[%c0_60, %c0_61] : memref<1x128xf32, #tpu.memory_space<vmem>>, vector<1x128xf32>
    %185 = vector.broadcast %184 : vector<1x128xf32> to vector<16x128xf32>
    %186 = arith.mulf %183, %185 : vector<16x128xf32>
    %c0_62 = arith.constant 0 : index
    %c0_63 = arith.constant 0 : index
    %187 = vector.load %arg12[%c0_62, %c0_63] : memref<1x128xf32, #tpu.memory_space<vmem>>, vector<1x128xf32>
    %188 = vector.broadcast %187 : vector<1x128xf32> to vector<16x128xf32>
    %189 = arith.addf %186, %188 : vector<16x128xf32>
    %190 = arith.truncf %189 : vector<16x128xf32> to vector<16x128xbf16>
    %c0_64 = arith.constant 0 : index
    %c0_65 = arith.constant 0 : index
    %191 = vector.load %arg7[%c0_64, %c0_65] : memref<128x512xbf16, #tpu.memory_space<vmem>>, vector<128x512xbf16>
    %cst_66 = arith.constant dense<0.000000e+00> : vector<16x512xf32>
    %192 = tpu.matmul %190, %191, %cst_66 {dimension_numbers = #tpu.dot_dimension_numbers<[1], [0], [0], [1], [0, 0, 1, 1], [], []>} : vector<16x128xbf16>, vector<128x512xbf16>, vector<16x512xf32> -> vector<16x512xf32>
    %c0_67 = arith.constant 0 : index
    %c0_68 = arith.constant 0 : index
    %193 = vector.load %arg8[%c0_67, %c0_68] : memref<1x512xf32, #tpu.memory_space<vmem>>, vector<1x512xf32>
    %194 = vector.broadcast %193 : vector<1x512xf32> to vector<16x512xf32>
    %195 = arith.addf %192, %194 : vector<16x512xf32>
    %cst_69 = arith.constant 0.000000e+00 : f32
    %196 = vector.broadcast %cst_69 : f32 to vector<16x512xf32>
    %197 = arith.maximumf %195, %196 : vector<16x512xf32>
    %198 = arith.truncf %197 : vector<16x512xf32> to vector<16x512xbf16>
    %c0_70 = arith.constant 0 : index
    %c0_71 = arith.constant 0 : index
    %199 = vector.load %arg9[%c0_70, %c0_71] : memref<512x128xbf16, #tpu.memory_space<vmem>>, vector<512x128xbf16>
    %cst_72 = arith.constant dense<0.000000e+00> : vector<16x128xf32>
    %200 = tpu.matmul %198, %199, %cst_72 {dimension_numbers = #tpu.dot_dimension_numbers<[1], [0], [0], [1], [0, 0, 1, 1], [], []>} : vector<16x512xbf16>, vector<512x128xbf16>, vector<16x128xf32> -> vector<16x128xf32>
    %c0_73 = arith.constant 0 : index
    %c0_74 = arith.constant 0 : index
    %201 = vector.load %arg10[%c0_73, %c0_74] : memref<1x128xf32, #tpu.memory_space<vmem>>, vector<1x128xf32>
    %202 = vector.broadcast %201 : vector<1x128xf32> to vector<16x128xf32>
    %203 = arith.addf %200, %202 : vector<16x128xf32>
    %204 = arith.addf %189, %203 : vector<16x128xf32>
    %cst_75 = arith.constant dense<0.000000e+00> : vector<16xf32>
    %205 = vector.multi_reduction <add>, %204, %cst_75 [1] : vector<16x128xf32> to vector<16xf32>
    %206 = vector.shape_cast %205 : vector<16xf32> to vector<16x1xf32>
    %cst_76 = arith.constant 1.280000e+02 : f32
    %207 = vector.broadcast %cst_76 : f32 to vector<16x1xf32>
    %208 = arith.divf %206, %207 : vector<16x1xf32>
    %209 = vector.broadcast %208 : vector<16x1xf32> to vector<16x128xf32>
    %210 = arith.subf %204, %209 : vector<16x128xf32>
    %211 = arith.mulf %210, %210 : vector<16x128xf32>
    %cst_77 = arith.constant dense<0.000000e+00> : vector<16xf32>
    %212 = vector.multi_reduction <add>, %211, %cst_77 [1] : vector<16x128xf32> to vector<16xf32>
    %213 = vector.shape_cast %212 : vector<16xf32> to vector<16x1xf32>
    %cst_78 = arith.constant 1.280000e+02 : f32
    %214 = vector.broadcast %cst_78 : f32 to vector<16x1xf32>
    %215 = arith.divf %213, %214 : vector<16x1xf32>
    %216 = vector.broadcast %208 : vector<16x1xf32> to vector<16x128xf32>
    %217 = arith.subf %204, %216 : vector<16x128xf32>
    %cst_79 = arith.constant 9.99999974E-6 : f32
    %218 = vector.broadcast %cst_79 : f32 to vector<16x1xf32>
    %219 = arith.addf %215, %218 : vector<16x1xf32>
    %220 = math.rsqrt %219 : vector<16x1xf32>
    %221 = vector.broadcast %220 : vector<16x1xf32> to vector<16x128xf32>
    %222 = arith.mulf %217, %221 : vector<16x128xf32>
    %c0_80 = arith.constant 0 : index
    %c0_81 = arith.constant 0 : index
    %223 = vector.load %arg13[%c0_80, %c0_81] : memref<1x128xf32, #tpu.memory_space<vmem>>, vector<1x128xf32>
    %224 = vector.broadcast %223 : vector<1x128xf32> to vector<16x128xf32>
    %225 = arith.mulf %222, %224 : vector<16x128xf32>
    %c0_82 = arith.constant 0 : index
    %c0_83 = arith.constant 0 : index
    %226 = vector.load %arg14[%c0_82, %c0_83] : memref<1x128xf32, #tpu.memory_space<vmem>>, vector<1x128xf32>
    %227 = vector.broadcast %226 : vector<1x128xf32> to vector<16x128xf32>
    %228 = arith.addf %225, %227 : vector<16x128xf32>
    %c0_84 = arith.constant 0 : index
    %c0_85 = arith.constant 0 : index
    %229 = vector.load %arg15[%c0_84, %c0_85] : memref<16x128xf32, #tpu.memory_space<vmem>>, vector<16x128xf32>
    tpu.vector_store %arg15[%c0_84, %c0_85], %228 {strides = array<i32>} : memref<16x128xf32, #tpu.memory_space<vmem>>, vector<16x128xf32>,
    return
  }
  func.func @transform_0(%arg0: i32) -> (i32, i32) {
    %c0_i32 = arith.constant 0 : i32
    %c0_i32_0 = arith.constant 0 : i32
    %c0_i32_1 = arith.constant 0 : i32
    return %c0_i32, %c0_i32_0 : i32, i32
  }
  func.func @transform_1(%arg0: i32) -> (i32, i32) {
    %c0_i32 = arith.constant 0 : i32
    %c0_i32_0 = arith.constant 0 : i32
    %c0_i32_1 = arith.constant 0 : i32
    return %c0_i32, %c0_i32_0 : i32, i32
  }
  func.func @transform_2(%arg0: i32) -> (i32, i32) {
    %c0_i32 = arith.constant 0 : i32
    %c0_i32_0 = arith.constant 0 : i32
    %c0_i32_1 = arith.constant 0 : i32
    return %c0_i32, %c0_i32_0 : i32, i32
  }
  func.func @transform_3(%arg0: i32) -> (i32, i32) {
    %c0_i32 = arith.constant 0 : i32
    %c0_i32_0 = arith.constant 0 : i32
    %c0_i32_1 = arith.constant 0 : i32
    return %c0_i32, %c0_i32_0 : i32, i32
  }
  func.func @transform_4(%arg0: i32) -> (i32, i32) {
    %c0_i32 = arith.constant 0 : i32
    %c0_i32_0 = arith.constant 0 : i32
    %c0_i32_1 = arith.constant 0 : i32
    return %c0_i32, %c0_i32_0 : i32, i32
  }
  func.func @transform_5(%arg0: i32) -> (i32, i32) {
    %c0_i32 = arith.constant 0 : i32
    %c0_i32_0 = arith.constant 0 : i32
    %c0_i32_1 = arith.constant 0 : i32
    return %c0_i32, %c0_i32_0 : i32, i32
  }
  func.func @transform_6(%arg0: i32) -> (i32, i32) {
    %c0_i32 = arith.constant 0 : i32
    %c0_i32_0 = arith.constant 0 : i32
    %c0_i32_1 = arith.constant 0 : i32
    return %c0_i32, %c0_i32_0 : i32, i32
  }
  func.func @transform_7(%arg0: i32) -> (i32, i32) {
    %c0_i32 = arith.constant 0 : i32
    %c0_i32_0 = arith.constant 0 : i32
    %c0_i32_1 = arith.constant 0 : i32
    return %c0_i32, %c0_i32_0 : i32, i32
  }
  func.func @transform_8(%arg0: i32) -> (i32, i32) {
    %c0_i32 = arith.constant 0 : i32
    %c0_i32_0 = arith.constant 0 : i32
    %c0_i32_1 = arith.constant 0 : i32
    return %c0_i32, %c0_i32_0 : i32, i32
  }
  func.func @transform_9(%arg0: i32) -> (i32, i32) {
    %c0_i32 = arith.constant 0 : i32
    %c0_i32_0 = arith.constant 0 : i32
    %c0_i32_1 = arith.constant 0 : i32
    return %c0_i32, %c0_i32_0 : i32, i32
  }
  func.func @transform_10(%arg0: i32) -> (i32, i32) {
    %c0_i32 = arith.constant 0 : i32
    %c0_i32_0 = arith.constant 0 : i32
    %c0_i32_1 = arith.constant 0 : i32
    return %c0_i32, %c0_i32_0 : i32, i32
  }
  func.func @transform_11(%arg0: i32) -> (i32, i32) {
    %c0_i32 = arith.constant 0 : i32
    %c0_i32_0 = arith.constant 0 : i32
    %c0_i32_1 = arith.constant 0 : i32
    return %c0_i32, %c0_i32_0 : i32, i32
  }
  func.func @transform_12(%arg0: i32) -> (i32, i32) {
    %c0_i32 = arith.constant 0 : i32
    %c0_i32_0 = arith.constant 0 : i32
    %c0_i32_1 = arith.constant 0 : i32
    return %c0_i32, %c0_i32_0 : i32, i32
  }
  func.func @transform_13(%arg0: i32) -> (i32, i32) {
    %c0_i32 = arith.constant 0 : i32
    %c0_i32_0 = arith.constant 0 : i32
    %c0_i32_1 = arith.constant 0 : i32
    return %c0_i32, %c0_i32_0 : i32, i32
  }
  func.func @transform_14(%arg0: i32) -> (i32, i32) {
    %c0_i32 = arith.constant 0 : i32
    %c0_i32_0 = arith.constant 0 : i32
    %c0_i32_1 = arith.constant 0 : i32
    return %c0_i32, %c0_i32_0 : i32, i32
  }
}

</mosaic_0001>

<llo_original>
// kernel: tpu_custom_call.1
$region0: #{tpu_custom_call.1}
  #allocation0 [shape = 'u32[]', space=smem, size = 0x4, offset = 0x4, fixed_abs, tag = 'smem constant byte address 0x4 - core index']
  #allocation1 [shape = 'u32[72,128]{1,0:T(1,128)}', space=vmem, size = 0x9000, scoped, tag = 'internal scratch']
  #allocation2 [shape = 'bf16[16,128]{1,0:T(8,128)(2,1)}', space=vmem, size = 0x1000, scoped, tag = 'scratch operand']
  %s0 = inlined_call_operand.hbm [shape: f32[16,128], index: 0, kind: input, shape index: {}]
  %s1 = inlined_call_operand.hbm [shape: f32[16,16], index: 1, kind: input, shape index: {}]
  %s2 = inlined_call_operand.hbm [shape: bf16[128,384], index: 2, kind: input, shape index: {}]
  %s3 = inlined_call_operand.hbm [shape: f32[1,384], index: 3, kind: input, shape index: {}]
  %s4 = inlined_call_operand.hbm [shape: bf16[128,128], index: 4, kind: input, shape index: {}]
  %s5 = inlined_call_operand.vmem [shape: f32[1,128], index: 5, kind: input, shape index: {}]
  %s6 = inlined_call_operand.hbm [shape: bf16[128,512], index: 6, kind: input, shape index: {}]
  %s7 = inlined_call_operand.vmem [shape: f32[1,512], index: 7, kind: input, shape index: {}]
  %s8 = inlined_call_operand.hbm [shape: bf16[512,128], index: 8, kind: input, shape index: {}]
  %s9 = inlined_call_operand.vmem [shape: f32[1,128], index: 9, kind: input, shape index: {}]
  %s10 = inlined_call_operand.vmem [shape: f32[1,128], index: 10, kind: input, shape index: {}]
  %s11 = inlined_call_operand.vmem [shape: f32[1,128], index: 11, kind: input, shape index: {}]
  %s12 = inlined_call_operand.vmem [shape: f32[1,128], index: 12, kind: input, shape index: {}]
  %s13 = inlined_call_operand.vmem [shape: f32[1,128], index: 13, kind: input, shape index: {}]
  %s14 = inlined_call_operand.hbm [shape: f32[16,128], index: 14, kind: output, shape index: {}]
  %s15 = sld [smem:[#allocation0]]
  $region94: #{tpu_custom_call.1} parent=0
    _
  %s17 = ssub.s32 1, %s15
  %s18 = scalar_select 0, %s17, %s15
  $region1: #{tpu_custom_call.1} parent=0
    #allocation3 [shape = 'u8[8192]{0}', space=vmem, size = 0x2000, scoped, tag = 'input window, operand 0, single buffered']
    #allocation4 [shape = 's32[1]{0}', space=sflag, size = 0x4, scoped, tag = 'scoped memory for tpu_custom_call.1']
    #allocation5 [shape = 's32[1]{0}', space=sflag, size = 0x4, scoped, tag = 'scoped memory for tpu_custom_call.1']
    #allocation6 [shape = 'u8[8192]{0}', space=vmem, size = 0x2000, scoped, tag = 'input window, operand 1, single buffered']
    #allocation7 [shape = 's32[1]{0}', space=sflag, size = 0x4, scoped, tag = 'scoped memory for tpu_custom_call.1']
    #allocation8 [shape = 'u8[98304]{0}', space=vmem, size = 0x18000, scoped, tag = 'input window, operand 2, single buffered']
    #allocation9 [shape = 'u8[1536]{0}', space=vmem, size = 0x800, scoped, tag = 'input window, operand 3, single buffered']
    #allocation10 [shape = 's32[1]{0}', space=sflag, size = 0x4, scoped, tag = 'scoped memory for tpu_custom_call.1']
    #allocation11 [shape = 'u8[32768]{0}', space=vmem, size = 0x8000, scoped, tag = 'input window, operand 4, single buffered']
    #allocation12 [shape = 'u8[131072]{0}', space=vmem, size = 0x20000, scoped, tag = 'input window, operand 6, single buffered']
    #allocation13 [shape = 's32[1]{0}', space=sflag, size = 0x4, scoped, tag = 'scoped memory for tpu_custom_call.1']
    #allocation14 [shape = 'u8[131072]{0}', space=vmem, size = 0x20000, scoped, tag = 'input window, operand 8, single buffered']
    #allocation15 [shape = 'u8[8192]{0}', space=vmem, size = 0x2000, scoped, tag = 'output window, operand 0, single buffered']
    %19 = vsyncpa [#allocation4], 0
    %20 = vsyncpa [#allocation7], 0
    %21 = vsyncpa [#allocation10], 0
    %22 = vsyncpa [#allocation13], 0
    %23 = vsyncpa [#allocation5], 0
    // Predicated region
    $region2: #{tpu_custom_call.1} parent=1 // pred_check
      _
    $region3: #{tpu_custom_call.1} parent=1 // pred_check_branch
      %25 = sbr.rel (0) target = $region5
    $region4: #{tpu_custom_call.1} parent=1 // pred_region
      %27 = vsyncadd [#allocation4], 0
      %s28 = sshll.u32 %s0, 4
      %s29 = int_to_ptr.hbm [resolvable:$true] %s28
      %s30 = sshll.u32 [#allocation3], 4
      %s31 = int_to_ptr.vmem [resolvable:$true] %s30
      %36 = dma.hbm_to_vmem [thread:$0]  %s29, 256, %s31, [#allocation4], 128, 128, 8
    $region5: #{tpu_custom_call.1} parent=1 // pred_fallthru
      _
    // Predicated region
    $region6: #{tpu_custom_call.1} parent=1 // pred_check
      _
    $region7: #{tpu_custom_call.1} parent=1 // pred_check_branch
      %38 = sbr.rel (0) target = $region9
    $region8: #{tpu_custom_call.1} parent=1 // pred_region
      %40 = vsyncadd [#allocation7], 0
      %s41 = sshll.u32 %s1, 4
      %s42 = int_to_ptr.hbm [resolvable:$true] %s41
      %s43 = sshll.u32 [#allocation6], 4
      %s44 = int_to_ptr.vmem [resolvable:$true] %s43
      %49 = dma.hbm_to_vmem [thread:$0]  %s42, 256, %s44, [#allocation7], 128, 128, 8
    $region9: #{tpu_custom_call.1} parent=1 // pred_fallthru
      _
    // Predicated region
    $region10: #{tpu_custom_call.1} parent=1 // pred_check
      _
    $region11: #{tpu_custom_call.1} parent=1 // pred_check_branch
      %51 = sbr.rel (0) target = $region13
    $region12: #{tpu_custom_call.1} parent=1 // pred_region
      %53 = vsyncadd [#allocation7], 0
      %s54 = sshll.u32 %s2, 4
      %s55 = int_to_ptr.hbm [resolvable:$true] %s54
      %s56 = sshll.u32 [#allocation8], 4
      %s57 = int_to_ptr.vmem [resolvable:$true] %s56
      %62 = dma.hbm_to_vmem [thread:$0]  %s55, 3072, %s57, [#allocation7], 192, 192, 12
    $region13: #{tpu_custom_call.1} parent=1 // pred_fallthru
      _
    // Predicated region
    $region14: #{tpu_custom_call.1} parent=1 // pred_check
      _
    $region15: #{tpu_custom_call.1} parent=1 // pred_check_branch
      %64 = sbr.rel (0) target = $region17
    $region16: #{tpu_custom_call.1} parent=1 // pred_region
      %66 = vsyncadd [#allocation10], 0
      %s68 = sshll.u32 %s3, 4
      %s69 = int_to_ptr.hbm [resolvable:$true] %s68
      %s70 = sshll.u32 [#allocation9], 4
      %s71 = int_to_ptr.vmem [resolvable:$true] %s70
      %73 = dma.hbm_to_vmem [thread:$0]  %s69, 48, %s71, [#allocation10]
    $region17: #{tpu_custom_call.1} parent=1 // pred_fallthru
      _
    // Predicated region
    $region18: #{tpu_custom_call.1} parent=1 // pred_check
      _
    $region19: #{tpu_custom_call.1} parent=1 // pred_check_branch
      %75 = sbr.rel (0) target = $region21
    $region20: #{tpu_custom_call.1} parent=1 // pred_region
      %77 = vsyncadd [#allocation10], 0
      %s78 = sshll.u32 %s4, 4
      %s79 = int_to_ptr.hbm [resolvable:$true] %s78
      %s80 = sshll.u32 [#allocation11], 4
      %s81 = int_to_ptr.vmem [resolvable:$true] %s80
      %86 = dma.hbm_to_vmem [thread:$0]  %s79, 1024, %s81, [#allocation10], 64, 64, 4
    $region21: #{tpu_custom_call.1} parent=1 // pred_fallthru
      _
    // Predicated region
    $region22: #{tpu_custom_call.1} parent=1 // pred_check
      _
    $region23: #{tpu_custom_call.1} parent=1 // pred_check_branch
      %88 = sbr.rel (0) target = $region25
    $region24: #{tpu_custom_call.1} parent=1 // pred_region
      _
    $region25: #{tpu_custom_call.1} parent=1 // pred_fallthru
      _
    // Predicated region
    $region26: #{tpu_custom_call.1} parent=1 // pred_check
      _
    $region27: #{tpu_custom_call.1} parent=1 // pred_check_branch
      %90 = sbr.rel (0) target = $region29
    $region28: #{tpu_custom_call.1} parent=1 // pred_region
      %92 = vsyncadd [#allocation13], 0
      %s93 = sshll.u32 %s6, 4
      %s94 = int_to_ptr.hbm [resolvable:$true] %s93
      %s95 = sshll.u32 [#allocation12], 4
      %s96 = int_to_ptr.vmem [resolvable:$true] %s95
      %101 = dma.hbm_to_vmem [thread:$0]  %s94, 4096, %s96, [#allocation13], 256, 256, 16
    $region29: #{tpu_custom_call.1} parent=1 // pred_fallthru
      _
    // Predicated region
    $region30: #{tpu_custom_call.1} parent=1 // pred_check
      _
    $region31: #{tpu_custom_call.1} parent=1 // pred_check_branch
      %103 = sbr.rel (0) target = $region33
    $region32: #{tpu_custom_call.1} parent=1 // pred_region
      _
    $region33: #{tpu_custom_call.1} parent=1 // pred_fallthru
      _
    // Predicated region
    $region34: #{tpu_custom_call.1} parent=1 // pred_check
      _
    $region35: #{tpu_custom_call.1} parent=1 // pred_check_branch
      %105 = sbr.rel (0) target = $region37
    $region36: #{tpu_custom_call.1} parent=1 // pred_region
      %107 = vsyncadd [#allocation13], 0
      %s108 = sshll.u32 %s8, 4
      %s109 = int_to_ptr.hbm [resolvable:$true] %s108
      %s110 = sshll.u32 [#allocation14], 4
      %s111 = int_to_ptr.vmem [resolvable:$true] %s110
      %116 = dma.hbm_to_vmem [thread:$0]  %s109, 4096, %s111, [#allocation13], 64, 64, 4
    $region37: #{tpu_custom_call.1} parent=1 // pred_fallthru
      _
    // Predicated region
    $region38: #{tpu_custom_call.1} parent=1 // pred_check
      _
    $region39: #{tpu_custom_call.1} parent=1 // pred_check_branch
      %118 = sbr.rel (0) target = $region41
    $region40: #{tpu_custom_call.1} parent=1 // pred_region
      _
    $region41: #{tpu_custom_call.1} parent=1 // pred_fallthru
      _
    // Predicated region
    $region42: #{tpu_custom_call.1} parent=1 // pred_check
      _
    $region43: #{tpu_custom_call.1} parent=1 // pred_check_branch
      %120 = sbr.rel (0) target = $region45
    $region44: #{tpu_custom_call.1} parent=1 // pred_region
      _
    $region45: #{tpu_custom_call.1} parent=1 // pred_fallthru
      _
    // Predicated region
    $region46: #{tpu_custom_call.1} parent=1 // pred_check
      _
    $region47: #{tpu_custom_call.1} parent=1 // pred_check_branch
      %122 = sbr.rel (0) target = $region49
    $region48: #{tpu_custom_call.1} parent=1 // pred_region
      _
    $region49: #{tpu_custom_call.1} parent=1 // pred_fallthru
      _
    // Predicated region
    $region50: #{tpu_custom_call.1} parent=1 // pred_check
      _
    $region51: #{tpu_custom_call.1} parent=1 // pred_check_branch
      %124 = sbr.rel (0) target = $region53
    $region52: #{tpu_custom_call.1} parent=1 // pred_region
      _
    $region53: #{tpu_custom_call.1} parent=1 // pred_fallthru
      _
    // Predicated region
    $region54: #{tpu_custom_call.1} parent=1 // pred_check
      _
    $region55: #{tpu_custom_call.1} parent=1 // pred_check_branch
      %126 = sbr.rel (0) target = $region57
    $region56: #{tpu_custom_call.1} parent=1 // pred_region
      _
    $region57: #{tpu_custom_call.1} parent=1 // pred_fallthru
      _
    // Predicated region
    $region58: #{tpu_custom_call.1} parent=1 // pred_check
      _
    $region59: #{tpu_custom_call.1} parent=1 // pred_check_branch
      %128 = sbr.rel (0) target = $region61
    $region60: #{tpu_custom_call.1} parent=1 // pred_region
      %130 = dma.done [#allocation4], 256
    $region61: #{tpu_custom_call.1} parent=1 // pred_fallthru
      _
    // Predicated region
    $region62: #{tpu_custom_call.1} parent=1 // pred_check
      _
    $region63: #{tpu_custom_call.1} parent=1 // pred_check_branch
      %132 = sbr.rel (0) target = $region65
    $region64: #{tpu_custom_call.1} parent=1 // pred_region
      %134 = dma.done [#allocation7], 256
    $region65: #{tpu_custom_call.1} parent=1 // pred_fallthru
      _
    // Predicated region
    $region66: #{tpu_custom_call.1} parent=1 // pred_check
      _
    $region67: #{tpu_custom_call.1} parent=1 // pred_check_branch
      %136 = sbr.rel (0) target = $region69
    $region68: #{tpu_custom_call.1} parent=1 // pred_region
      %138 = dma.done [#allocation7], 3072
    $region69: #{tpu_custom_call.1} parent=1 // pred_fallthru
      _
    // Predicated region
    $region70: #{tpu_custom_call.1} parent=1 // pred_check
      _
    $region71: #{tpu_custom_call.1} parent=1 // pred_check_branch
      %140 = sbr.rel (0) target = $region73
    $region72: #{tpu_custom_call.1} parent=1 // pred_region
      %142 = dma.done [#allocation10], 48
    $region73: #{tpu_custom_call.1} parent=1 // pred_fallthru
      _
    // Predicated region
    $region74: #{tpu_custom_call.1} parent=1 // pred_check
      _
    $region75: #{tpu_custom_call.1} parent=1 // pred_check_branch
      %144 = sbr.rel (0) target = $region77
    $region76: #{tpu_custom_call.1} parent=1 // pred_region
      %146 = dma.done [#allocation10], 1024
    $region77: #{tpu_custom_call.1} parent=1 // pred_fallthru
      _
    // Predicated region
    $region78: #{tpu_custom_call.1} parent=1 // pred_check
      _
    $region79: #{tpu_custom_call.1} parent=1 // pred_check_branch
      %148 = sbr.rel (0) target = $region81
    $region80: #{tpu_custom_call.1} parent=1 // pred_region
      %150 = dma.done [#allocation13], 4096
    $region81: #{tpu_custom_call.1} parent=1 // pred_fallthru
      _
    // Predicated region
    $region82: #{tpu_custom_call.1} parent=1 // pred_check
      _
    $region83: #{tpu_custom_call.1} parent=1 // pred_check_branch
      %152 = sbr.rel (0) target = $region85
    $region84: #{tpu_custom_call.1} parent=1 // pred_region
      %154 = dma.done [#allocation13], 4096
    $region85: #{tpu_custom_call.1} parent=1 // pred_fallthru
      _
    %v156 = vld [vmem:[#allocation3] sm:$0xff]
    %v157 = vld [vmem:[#allocation3 + $0x8] sm:$0xff]
    %v158 = vld [vmem:[#allocation6] sm:$0xff]
    %v159 = vld [vmem:[#allocation6 + $0x8] sm:$0xff]
    %v160 = vpack.c.bf16 %v157, %v156
    %v161 = vld [vmem:[#allocation8] sm:$0xff]
    %v162 = vld [vmem:[#allocation8 + $0x8] sm:$0xf]
    %v163 = vld [vmem:[#allocation8 + $0xc] sm:$0xff]
    %v164 = vld [vmem:[#allocation8 + $0x14] sm:$0xf]
    %v165 = vld [vmem:[#allocation8 + $0x18] sm:$0xff]
    %v166 = vld [vmem:[#allocation8 + $0x20] sm:$0xf]
    %v167 = vld [vmem:[#allocation8 + $0x24] sm:$0xff]
    %v168 = vld [vmem:[#allocation8 + $0x2c] sm:$0xf]
    %v169 = vld [vmem:[#allocation8 + $0x30] sm:$0xff]
    %v170 = vld [vmem:[#allocation8 + $0x38] sm:$0xf]
    %v171 = vld [vmem:[#allocation8 + $0x3c] sm:$0xff]
    %v172 = vld [vmem:[#allocation8 + $0x44] sm:$0xf]
    %v173 = vld [vmem:[#allocation8 + $0x48] sm:$0xff]
    %v174 = vld [vmem:[#allocation8 + $0x50] sm:$0xf]
    %v175 = vld [vmem:[#allocation8 + $0x54] sm:$0xff]
    %v176 = vld [vmem:[#allocation8 + $0x5c] sm:$0xf]
    %v177 = vld [vmem:[#allocation8 + $0x60] sm:$0xff]
    %v178 = vld [vmem:[#allocation8 + $0x68] sm:$0xf]
    %v179 = vld [vmem:[#allocation8 + $0x6c] sm:$0xff]
    %v180 = vld [vmem:[#allocation8 + $0x74] sm:$0xf]
    %v181 = vld [vmem:[#allocation8 + $0x78] sm:$0xff]
    %v182 = vld [vmem:[#allocation8 + $0x80] sm:$0xf]
    %v183 = vld [vmem:[#allocation8 + $0x84] sm:$0xff]
    %v184 = vld [vmem:[#allocation8 + $0x8c] sm:$0xf]
    %v185 = vld [vmem:[#allocation8 + $0x90] sm:$0xff]
    %v186 = vld [vmem:[#allocation8 + $0x98] sm:$0xf]
    %v187 = vld [vmem:[#allocation8 + $0x9c] sm:$0xff]
    %v188 = vld [vmem:[#allocation8 + $0xa4] sm:$0xf]
    %v189 = vld [vmem:[#allocation8 + $0xa8] sm:$0xff]
    %v190 = vld [vmem:[#allocation8 + $0xb0] sm:$0xf]
    %v191 = vld [vmem:[#allocation8 + $0xb4] sm:$0xff]
    %v192 = vld [vmem:[#allocation8 + $0xbc] sm:$0xf]
    %v193 = vld [vmem:[#allocation9] sm:$0x7]
    %v195 = vperm.slane %v193, 0
    %v196 = vperm.slane %v193, 1
    %v197 = vperm.slane %v193, 2
    %v233 = vunpack.c.l.b16 %v161
    %v234 = vunpack.c.h.b16 %v161
    %v235 = vunpack.c.l.b16 %v162
    %v236 = vunpack.c.l.b16 %v163
    %v237 = vunpack.c.h.b16 %v163
    %v238 = vunpack.c.l.b16 %v164
    %v239 = vunpack.c.l.b16 %v165
    %v240 = vunpack.c.h.b16 %v165
    %v241 = vunpack.c.l.b16 %v166
    %v242 = vunpack.c.l.b16 %v167
    %v243 = vunpack.c.h.b16 %v167
    %v244 = vunpack.c.l.b16 %v168
    %v245 = vunpack.c.l.b16 %v169
    %v246 = vunpack.c.h.b16 %v169
    %v247 = vunpack.c.l.b16 %v170
    %v248 = vunpack.c.l.b16 %v171
    %v249 = vunpack.c.h.b16 %v171
    %v250 = vunpack.c.l.b16 %v172
    %v251 = vunpack.c.l.b16 %v173
    %v252 = vunpack.c.h.b16 %v173
    %v253 = vunpack.c.l.b16 %v174
    %v254 = vunpack.c.l.b16 %v175
    %v255 = vunpack.c.h.b16 %v175
    %v256 = vunpack.c.l.b16 %v176
    %v257 = vunpack.c.l.b16 %v177
    %v258 = vunpack.c.h.b16 %v177
    %v259 = vunpack.c.l.b16 %v178
    %v260 = vunpack.c.l.b16 %v179
    %v261 = vunpack.c.h.b16 %v179
    %v262 = vunpack.c.l.b16 %v180
    %v263 = vunpack.c.l.b16 %v181
    %v264 = vunpack.c.h.b16 %v181
    %v265 = vunpack.c.l.b16 %v182
    %v266 = vunpack.c.l.b16 %v183
    %v267 = vunpack.c.h.b16 %v183
    %v268 = vunpack.c.l.b16 %v184
    %v269 = vunpack.c.l.b16 %v185
    %v270 = vunpack.c.h.b16 %v185
    %v271 = vunpack.c.l.b16 %v186
    %v272 = vunpack.c.l.b16 %v187
    %v273 = vunpack.c.h.b16 %v187
    %v274 = vunpack.c.l.b16 %v188
    %v275 = vunpack.c.l.b16 %v189
    %v276 = vunpack.c.h.b16 %v189
    %v277 = vunpack.c.l.b16 %v190
    %v278 = vunpack.c.l.b16 %v191
    %v279 = vunpack.c.h.b16 %v191
    %v280 = vunpack.c.l.b16 %v192
    %v281 = vpack.c.b16 %v236, %v233
    %v282 = vpack.c.b16 %v237, %v234
    %v283 = vpack.c.b16 %v238, %v235
    %v284 = vpack.c.b16 %v242, %v239
    %v285 = vpack.c.b16 %v243, %v240
    %v286 = vpack.c.b16 %v244, %v241
    %v287 = vpack.c.b16 %v248, %v245
    %v288 = vpack.c.b16 %v249, %v246
    %v289 = vpack.c.b16 %v250, %v247
    %v290 = vpack.c.b16 %v254, %v251
    %v291 = vpack.c.b16 %v255, %v252
    %v292 = vpack.c.b16 %v256, %v253
    %v293 = vpack.c.b16 %v260, %v257
    %v294 = vpack.c.b16 %v261, %v258
    %v295 = vpack.c.b16 %v262, %v259
    %v296 = vpack.c.b16 %v266, %v263
    %v297 = vpack.c.b16 %v267, %v264
    %v298 = vpack.c.b16 %v268, %v265
    %v299 = vpack.c.b16 %v272, %v269
    %v300 = vpack.c.b16 %v273, %v270
    %v301 = vpack.c.b16 %v274, %v271
    %v302 = vpack.c.b16 %v278, %v275
    %v303 = vpack.c.b16 %v279, %v276
    %v304 = vpack.c.b16 %v280, %v277
    %329 = vmatpush.bf16.msra.mxu0 %v302
    %330 = vmatpush.bf16.msra.mxu0 %v299
    %331 = vmatpush.bf16.msra.mxu0 %v296
    %332 = vmatpush.bf16.msra.mxu0 %v293
    %333 = vmatpush.bf16.msra.mxu0 %v290
    %334 = vmatpush.bf16.msra.mxu0 %v287
    %335 = vmatpush.bf16.msra.mxu0 %v284
    %336 = vmatpush.bf16.msra.mxu0 %v281
    %337 = vmatmul.bf16.gmra.mxu0 %v160
    %v338 = vpop.f32.mrf.mxu0
    %v339 = vadd.f32 %v195, %v338
    %v340 = vpop.f32.mrf.mxu0
    %v341 = vadd.f32 %v195, %v340
    %342 = vdwg.mxu0
    %343 = vmatpush.bf16.msra.mxu0 %v303
    %344 = vmatpush.bf16.msra.mxu0 %v300
    %345 = vmatpush.bf16.msra.mxu0 %v297
    %346 = vmatpush.bf16.msra.mxu0 %v294
    %347 = vmatpush.bf16.msra.mxu0 %v291
    %348 = vmatpush.bf16.msra.mxu0 %v288
    %349 = vmatpush.bf16.msra.mxu0 %v285
    %350 = vmatpush.bf16.msra.mxu0 %v282
    %351 = vmatmul.bf16.gmra.mxu0 %v160
    %v352 = vpop.f32.mrf.mxu0
    %v353 = vadd.f32 %v196, %v352
    %v354 = vpop.f32.mrf.mxu0
    %v355 = vadd.f32 %v196, %v354
    %356 = vdwg.mxu0
    %357 = vmatpush.bf16.msra.mxu0 %v304
    %358 = vmatpush.bf16.msra.mxu0 %v301
    %359 = vmatpush.bf16.msra.mxu0 %v298
    %360 = vmatpush.bf16.msra.mxu0 %v295
    %361 = vmatpush.bf16.msra.mxu0 %v292
    %362 = vmatpush.bf16.msra.mxu0 %v289
    %363 = vmatpush.bf16.msra.mxu0 %v286
    %364 = vmatpush.bf16.msra.mxu0 %v283
    %365 = vmatmul.bf16.gmra.mxu0 %v160
    %v366 = vpop.f32.mrf.mxu0
    %v367 = vadd.f32 %v197, %v366
    %v368 = vpop.f32.mrf.mxu0
    %v369 = vadd.f32 %v197, %v368
    %370 = vdwg.mxu0
    %v371 = vpack.c.bf16 %v339, %v339
    %v372 = vpack.c.bf16 %v341, %v341
    %v373 = vpack.c.bf16 %v353, %v353
    %v374 = vpack.c.bf16 %v355, %v355
    %v375 = vpack.c.bf16 %v367, %v367
    %v376 = vpack.c.bf16 %v369, %v369
    %v379 = vunpack.c.l.b16 %v371
    %v380 = vunpack.c.l.b16 %v372
    %v381 = vpack.c.b16 %v380, %v379
    %v384 = vunpack.c.l.b16 %v373
    %v385 = vunpack.c.l.b16 %v374
    %v386 = vpack.c.b16 %v385, %v384
    %vm387 = vcmask 130048
    %v389 = vsel %vm387, %v381, 0
    %v392 = vsel %vm387, %v386, 0
    %394 = vmatpush.bf16.xpose.msra.mxu0 0
    %395 = vmatpush.bf16.xpose.msra.mxu0 0
    %396 = vmatpush.bf16.xpose.msra.mxu0 0
    %397 = vmatpush.bf16.xpose.msra.mxu0 0
    %398 = vmatpush.bf16.xpose.msra.mxu0 0
    %399 = vmatpush.bf16.xpose.msra.mxu0 0
    %400 = vmatpush.bf16.xpose.msra.mxu0 0
    %401 = vmatpush.bf16.xpose.msra.mxu0 %v392
    %402 = vmatmul.bf16.gmra.mxu0 %v389
    %v403 = vpop.f32.mrf.mxu0
    %v404 = vadd.f32 %v158, %v403
    %v405 = vpop.f32.mrf.mxu0
    %v406 = vadd.f32 %v159, %v405
    %407 = vdwg.mxu0
    %v408 = vsel %vm387, %v404, -inf
    %409 = vmax.xlane.f32.xlu0 %v408
    %v410 = vpop.xlane.xlu0 %409
    %v411 = vsel %vm387, %v406, -inf
    %412 = vmax.xlane.f32.xlu0 %v411
    %v413 = vpop.xlane.xlu0 %412
    %v414 = vsub.f32 %v404, %v410
    %v415 = vsub.f32 %v406, %v413
    %v416 = vmul.f32 %v414, 1.442695
    %v417 = vpow.pop %v416
    %v418 = vmul.f32 %v415, 1.442695
    %v419 = vpow.pop %v418
    %v420 = vsel %vm387, %v417, 0.0
    %421 = vadd.xlane.f32.xlu0 %v420
    %v422 = vpop.xlane.xlu0 %421
    %v423 = vsel %vm387, %v419, 0.0
    %424 = vadd.xlane.f32.xlu0 %v423
    %v425 = vpop.xlane.xlu0 %424
    %v426 = vrcp.pop %v422
    %v427 = vmul.f32 %v422, %v426
    %v428 = vsub.f32 1.0, %v427
    %v429 = vmul.f32 %v426, %v428
    %v430 = vadd.f32 %v426, %v429
    %vm431 = vweird.f32 %v422
    %vm432 = vweird.f32 %v426
    %vm433 = vmor %vm431, %vm432
    %v434 = vsel %vm433, %v426, %v430
    %v435 = vand.u32 2147483647, %v422
    %vm436 = vcmp.eq.f32.partialorder %v435, 8.507059e+37
    %v437 = vand.u32 %v422, 2147483648
    %v438 = vor.u32 1.1754944e-38, %v437
    %v439 = vsel %vm436, %v438, %v434
    %v440 = vmul.f32 %v417, %v439
    %v441 = vrcp.pop %v425
    %v442 = vmul.f32 %v425, %v441
    %v443 = vsub.f32 1.0, %v442
    %v444 = vmul.f32 %v441, %v443
    %v445 = vadd.f32 %v441, %v444
    %vm446 = vweird.f32 %v425
    %vm447 = vweird.f32 %v441
    %vm448 = vmor %vm446, %vm447
    %v449 = vsel %vm448, %v441, %v445
    %v450 = vand.u32 2147483647, %v425
    %vm451 = vcmp.eq.f32.partialorder %v450, 8.507059e+37
    %v452 = vand.u32 %v425, 2147483648
    %v453 = vor.u32 1.1754944e-38, %v452
    %v454 = vsel %vm451, %v453, %v449
    %v455 = vmul.f32 %v419, %v454
    %v456 = vpack.c.bf16 %v455, %v440
    %v459 = vunpack.c.l.b16 %v375
    %v460 = vunpack.c.l.b16 %v376
    %v461 = vpack.c.b16 %v460, %v459
    %v464 = vsel %vm387, %v456, 0
    %466 = vmatpush.bf16.msra.mxu0 0
    %467 = vmatpush.bf16.msra.mxu0 0
    %468 = vmatpush.bf16.msra.mxu0 0
    %469 = vmatpush.bf16.msra.mxu0 0
    %470 = vmatpush.bf16.msra.mxu0 0
    %471 = vmatpush.bf16.msra.mxu0 0
    %472 = vmatpush.bf16.msra.mxu0 0
    %473 = vmatpush.bf16.msra.mxu0 %v461
    %474 = vmatmul.bf16.gmra.mxu0 %v464
    %v475 = vpop.f32.mrf.mxu0
    %v476 = vadd.f32 0.0, %v475
    %v477 = vpop.f32.mrf.mxu0
    %v478 = vadd.f32 0.0, %v477
    %479 = vdwg.mxu0
    %v480 = vpack.c.bf16 %v476, %v476
    %v481 = vpack.c.bf16 %v478, %v478
    %vm482 = vcmask 125952
    %483 = vst.msk [vmem:[#allocation2] sm:$0xf] %vm482, %v480
    %484 = vst.msk [vmem:[#allocation2 + $0x4] sm:$0xf] %vm482, %v481
    %485 = vrot.lane.b32.xlu0 %v381, 112
    %v486 = vpop.permute.xlu0 %485
    %487 = vrot.lane.b32.xlu0 %v386, 112
    %v488 = vpop.permute.xlu0 %487
    %v490 = vsel %vm387, %v486, 0
    %v493 = vsel %vm387, %v488, 0
    %495 = vmatpush.bf16.xpose.msra.mxu0 0
    %496 = vmatpush.bf16.xpose.msra.mxu0 0
    %497 = vmatpush.bf16.xpose.msra.mxu0 0
    %498 = vmatpush.bf16.xpose.msra.mxu0 0
    %499 = vmatpush.bf16.xpose.msra.mxu0 0
    %500 = vmatpush.bf16.xpose.msra.mxu0 0
    %501 = vmatpush.bf16.xpose.msra.mxu0 0
    %502 = vmatpush.bf16.xpose.msra.mxu0 %v493
    %503 = vmatmul.bf16.gmra.mxu0 %v490
    %v504 = vpop.f32.mrf.mxu0
    %v505 = vadd.f32 %v158, %v504
    %v506 = vpop.f32.mrf.mxu0
    %v507 = vadd.f32 %v159, %v506
    %508 = vdwg.mxu0
    %v509 = vsel %vm387, %v505, -inf
    %510 = vmax.xlane.f32.xlu0 %v509
    %v511 = vpop.xlane.xlu0 %510
    %v512 = vsel %vm387, %v507, -inf
    %513 = vmax.xlane.f32.xlu0 %v512
    %v514 = vpop.xlane.xlu0 %513
    %v515 = vsub.f32 %v505, %v511
    %v516 = vsub.f32 %v507, %v514
    %v517 = vmul.f32 %v515, 1.442695
    %v518 = vpow.pop %v517
    %v519 = vmul.f32 %v516, 1.442695
    %v520 = vpow.pop %v519
    %v521 = vsel %vm387, %v518, 0.0
    %522 = vadd.xlane.f32.xlu0 %v521
    %v523 = vpop.xlane.xlu0 %522
    %v524 = vsel %vm387, %v520, 0.0
    %525 = vadd.xlane.f32.xlu0 %v524
    %v526 = vpop.xlane.xlu0 %525
    %v527 = vrcp.pop %v523
    %v528 = vmul.f32 %v523, %v527
    %v529 = vsub.f32 1.0, %v528
    %v530 = vmul.f32 %v527, %v529
    %v531 = vadd.f32 %v527, %v530
    %vm532 = vweird.f32 %v523
    %vm533 = vweird.f32 %v527
    %vm534 = vmor %vm532, %vm533
    %v535 = vsel %vm534, %v527, %v531
    %v536 = vand.u32 2147483647, %v523
    %vm537 = vcmp.eq.f32.partialorder %v536, 8.507059e+37
    %v538 = vand.u32 %v523, 2147483648
    %v539 = vor.u32 1.1754944e-38, %v538
    %v540 = vsel %vm537, %v539, %v535
    %v541 = vmul.f32 %v518, %v540
    %v542 = vrcp.pop %v526
    %v543 = vmul.f32 %v526, %v542
    %v544 = vsub.f32 1.0, %v543
    %v545 = vmul.f32 %v542, %v544
    %v546 = vadd.f32 %v542, %v545
    %vm547 = vweird.f32 %v526
    %vm548 = vweird.f32 %v542
    %vm549 = vmor %vm547, %vm548
    %v550 = vsel %vm549, %v542, %v546
    %v551 = vand.u32 2147483647, %v526
    %vm552 = vcmp.eq.f32.partialorder %v551, 8.507059e+37
    %v553 = vand.u32 %v526, 2147483648
    %v554 = vor.u32 1.1754944e-38, %v553
    %v555 = vsel %vm552, %v554, %v550
    %v556 = vmul.f32 %v520, %v555
    %v557 = vpack.c.bf16 %v556, %v541
    %558 = vrot.lane.b32.xlu0 %v461, 112
    %v559 = vpop.permute.xlu0 %558
    %v562 = vsel %vm387, %v557, 0
    %564 = vmatpush.bf16.msra.mxu0 0
    %565 = vmatpush.bf16.msra.mxu0 0
    %566 = vmatpush.bf16.msra.mxu0 0
    %567 = vmatpush.bf16.msra.mxu0 0
    %568 = vmatpush.bf16.msra.mxu0 0
    %569 = vmatpush.bf16.msra.mxu0 0
    %570 = vmatpush.bf16.msra.mxu0 0
    %571 = vmatpush.bf16.msra.mxu0 %v559
    %572 = vmatmul.bf16.gmra.mxu0 %v562
    %v573 = vpop.f32.mrf.mxu0
    %v574 = vadd.f32 0.0, %v573
    %v575 = vpop.f32.mrf.mxu0
    %v576 = vadd.f32 0.0, %v575
    %577 = vdwg.mxu0
    %v578 = vpack.c.bf16 %v574, %v574
    %v579 = vpack.c.bf16 %v576, %v576
    %582 = vrot.lane.b32.xlu0 %v578, 16
    %v583 = vpop.permute.xlu0 %582
    %584 = vrot.lane.b32.xlu0 %v579, 16
    %v585 = vpop.permute.xlu0 %584
    %vm588 = vcmask 257152
    %589 = vst.msk [vmem:[#allocation2] sm:$0xf] %vm588, %v583
    %590 = vst.msk [vmem:[#allocation2 + $0x4] sm:$0xf] %vm588, %v585
    %591 = vrot.lane.b32.xlu0 %v381, 96
    %v592 = vpop.permute.xlu0 %591
    %593 = vrot.lane.b32.xlu0 %v386, 96
    %v594 = vpop.permute.xlu0 %593
    %v596 = vsel %vm387, %v592, 0
    %v599 = vsel %vm387, %v594, 0
    %601 = vmatpush.bf16.xpose.msra.mxu0 0
    %602 = vmatpush.bf16.xpose.msra.mxu0 0
    %603 = vmatpush.bf16.xpose.msra.mxu0 0
    %604 = vmatpush.bf16.xpose.msra.mxu0 0
    %605 = vmatpush.bf16.xpose.msra.mxu0 0
    %606 = vmatpush.bf16.xpose.msra.mxu0 0
    %607 = vmatpush.bf16.xpose.msra.mxu0 0
    %608 = vmatpush.bf16.xpose.msra.mxu0 %v599
    %609 = vmatmul.bf16.gmra.mxu0 %v596
    %v610 = vpop.f32.mrf.mxu0
    %v611 = vadd.f32 %v158, %v610
    %v612 = vpop.f32.mrf.mxu0
    %v613 = vadd.f32 %v159, %v612
    %614 = vdwg.mxu0
    %v615 = vsel %vm387, %v611, -inf
    %616 = vmax.xlane.f32.xlu0 %v615
    %v617 = vpop.xlane.xlu0 %616
    %v618 = vsel %vm387, %v613, -inf
    %619 = vmax.xlane.f32.xlu0 %v618
    %v620 = vpop.xlane.xlu0 %619
    %v621 = vsub.f32 %v611, %v617
    %v622 = vsub.f32 %v613, %v620
    %v623 = vmul.f32 %v621, 1.442695
    %v624 = vpow.pop %v623
    %v625 = vmul.f32 %v622, 1.442695
    %v626 = vpow.pop %v625
    %v627 = vsel %vm387, %v624, 0.0
    %628 = vadd.xlane.f32.xlu0 %v627
    %v629 = vpop.xlane.xlu0 %628
    %v630 = vsel %vm387, %v626, 0.0
    %631 = vadd.xlane.f32.xlu0 %v630
    %v632 = vpop.xlane.xlu0 %631
    %v633 = vrcp.pop %v629
    %v634 = vmul.f32 %v629, %v633
    %v635 = vsub.f32 1.0, %v634
    %v636 = vmul.f32 %v633, %v635
    %v637 = vadd.f32 %v633, %v636
    %vm638 = vweird.f32 %v629
    %vm639 = vweird.f32 %v633
    %vm640 = vmor %vm638, %vm639
    %v641 = vsel %vm640, %v633, %v637
    %v642 = vand.u32 2147483647, %v629
    %vm643 = vcmp.eq.f32.partialorder %v642, 8.507059e+37
    %v644 = vand.u32 %v629, 2147483648
    %v645 = vor.u32 1.1754944e-38, %v644
    %v646 = vsel %vm643, %v645, %v641
    %v647 = vmul.f32 %v624, %v646
    %v648 = vrcp.pop %v632
    %v649 = vmul.f32 %v632, %v648
    %v650 = vsub.f32 1.0, %v649
    %v651 = vmul.f32 %v648, %v650
    %v652 = vadd.f32 %v648, %v651
    %vm653 = vweird.f32 %v632
    %vm654 = vweird.f32 %v648
    %vm655 = vmor %vm653, %vm654
    %v656 = vsel %vm655, %v648, %v652
    %v657 = vand.u32 2147483647, %v632
    %vm658 = vcmp.eq.f32.partialorder %v657, 8.507059e+37
    %v659 = vand.u32 %v632, 2147483648
    %v660 = vor.u32 1.1754944e-38, %v659
    %v661 = vsel %vm658, %v660, %v656
    %v662 = vmul.f32 %v626, %v661
    %v663 = vpack.c.bf16 %v662, %v647
    %664 = vrot.lane.b32.xlu0 %v461, 96
    %v665 = vpop.permute.xlu0 %664
    %v668 = vsel %vm387, %v663, 0
    %670 = vmatpush.bf16.msra.mxu0 0
    %671 = vmatpush.bf16.msra.mxu0 0
    %672 = vmatpush.bf16.msra.mxu0 0
    %673 = vmatpush.bf16.msra.mxu0 0
    %674 = vmatpush.bf16.msra.mxu0 0
    %675 = vmatpush.bf16.msra.mxu0 0
    %676 = vmatpush.bf16.msra.mxu0 0
    %677 = vmatpush.bf16.msra.mxu0 %v665
    %678 = vmatmul.bf16.gmra.mxu0 %v668
    %v679 = vpop.f32.mrf.mxu0
    %v680 = vadd.f32 0.0, %v679
    %v681 = vpop.f32.mrf.mxu0
    %v682 = vadd.f32 0.0, %v681
    %683 = vdwg.mxu0
    %v684 = vpack.c.bf16 %v680, %v680
    %v685 = vpack.c.bf16 %v682, %v682
    %688 = vrot.lane.b32.xlu0 %v684, 32
    %v689 = vpop.permute.xlu0 %688
    %690 = vrot.lane.b32.xlu0 %v685, 32
    %v691 = vpop.permute.xlu0 %690
    %vm694 = vcmask 388352
    %695 = vst.msk [vmem:[#allocation2] sm:$0xf] %vm694, %v689
    %696 = vst.msk [vmem:[#allocation2 + $0x4] sm:$0xf] %vm694, %v691
    %697 = vrot.lane.b32.xlu0 %v381, 80
    %v698 = vpop.permute.xlu0 %697
    %699 = vrot.lane.b32.xlu0 %v386, 80
    %v700 = vpop.permute.xlu0 %699
    %v702 = vsel %vm387, %v698, 0
    %v705 = vsel %vm387, %v700, 0
    %707 = vmatpush.bf16.xpose.msra.mxu0 0
    %708 = vmatpush.bf16.xpose.msra.mxu0 0
    %709 = vmatpush.bf16.xpose.msra.mxu0 0
    %710 = vmatpush.bf16.xpose.msra.mxu0 0
    %711 = vmatpush.bf16.xpose.msra.mxu0 0
    %712 = vmatpush.bf16.xpose.msra.mxu0 0
    %713 = vmatpush.bf16.xpose.msra.mxu0 0
    %714 = vmatpush.bf16.xpose.msra.mxu0 %v705
    %715 = vmatmul.bf16.gmra.mxu0 %v702
    %v716 = vpop.f32.mrf.mxu0
    %v717 = vadd.f32 %v158, %v716
    %v718 = vpop.f32.mrf.mxu0
    %v719 = vadd.f32 %v159, %v718
    %720 = vdwg.mxu0
    %v721 = vsel %vm387, %v717, -inf
    %722 = vmax.xlane.f32.xlu0 %v721
    %v723 = vpop.xlane.xlu0 %722
    %v724 = vsel %vm387, %v719, -inf
    %725 = vmax.xlane.f32.xlu0 %v724
    %v726 = vpop.xlane.xlu0 %725
    %v727 = vsub.f32 %v717, %v723
    %v728 = vsub.f32 %v719, %v726
    %v729 = vmul.f32 %v727, 1.442695
    %v730 = vpow.pop %v729
    %v731 = vmul.f32 %v728, 1.442695
    %v732 = vpow.pop %v731
    %v733 = vsel %vm387, %v730, 0.0
    %734 = vadd.xlane.f32.xlu0 %v733
    %v735 = vpop.xlane.xlu0 %734
    %v736 = vsel %vm387, %v732, 0.0
    %737 = vadd.xlane.f32.xlu0 %v736
    %v738 = vpop.xlane.xlu0 %737
    %v739 = vrcp.pop %v735
    %v740 = vmul.f32 %v735, %v739
    %v741 = vsub.f32 1.0, %v740
    %v742 = vmul.f32 %v739, %v741
    %v743 = vadd.f32 %v739, %v742
    %vm744 = vweird.f32 %v735
    %vm745 = vweird.f32 %v739
    %vm746 = vmor %vm744, %vm745
    %v747 = vsel %vm746, %v739, %v743
    %v748 = vand.u32 2147483647, %v735
    %vm749 = vcmp.eq.f32.partialorder %v748, 8.507059e+37
    %v750 = vand.u32 %v735, 2147483648
    %v751 = vor.u32 1.1754944e-38, %v750
    %v752 = vsel %vm749, %v751, %v747
    %v753 = vmul.f32 %v730, %v752
    %v754 = vrcp.pop %v738
    %v755 = vmul.f32 %v738, %v754
    %v756 = vsub.f32 1.0, %v755
    %v757 = vmul.f32 %v754, %v756
    %v758 = vadd.f32 %v754, %v757
    %vm759 = vweird.f32 %v738
    %vm760 = vweird.f32 %v754
    %vm761 = vmor %vm759, %vm760
    %v762 = vsel %vm761, %v754, %v758
    %v763 = vand.u32 2147483647, %v738
    %vm764 = vcmp.eq.f32.partialorder %v763, 8.507059e+37
    %v765 = vand.u32 %v738, 2147483648
    %v766 = vor.u32 1.1754944e-38, %v765
    %v767 = vsel %vm764, %v766, %v762
    %v768 = vmul.f32 %v732, %v767
    %v769 = vpack.c.bf16 %v768, %v753
    %770 = vrot.lane.b32.xlu0 %v461, 80
    %v771 = vpop.permute.xlu0 %770
    %v774 = vsel %vm387, %v769, 0
    %776 = vmatpush.bf16.msra.mxu0 0
    %777 = vmatpush.bf16.msra.mxu0 0
    %778 = vmatpush.bf16.msra.mxu0 0
    %779 = vmatpush.bf16.msra.mxu0 0
    %780 = vmatpush.bf16.msra.mxu0 0
    %781 = vmatpush.bf16.msra.mxu0 0
    %782 = vmatpush.bf16.msra.mxu0 0
    %783 = vmatpush.bf16.msra.mxu0 %v771
    %784 = vmatmul.bf16.gmra.mxu0 %v774
    %v785 = vpop.f32.mrf.mxu0
    %v786 = vadd.f32 0.0, %v785
    %v787 = vpop.f32.mrf.mxu0
    %v788 = vadd.f32 0.0, %v787
    %789 = vdwg.mxu0
    %v790 = vpack.c.bf16 %v786, %v786
    %v791 = vpack.c.bf16 %v788, %v788
    %794 = vrot.lane.b32.xlu0 %v790, 48
    %v795 = vpop.permute.xlu0 %794
    %796 = vrot.lane.b32.xlu0 %v791, 48
    %v797 = vpop.permute.xlu0 %796
    %vm800 = vcmask 519552
    %801 = vst.msk [vmem:[#allocation2] sm:$0xf] %vm800, %v795
    %802 = vst.msk [vmem:[#allocation2 + $0x4] sm:$0xf] %vm800, %v797
    %803 = vrot.lane.b32.xlu0 %v381, 64
    %v804 = vpop.permute.xlu0 %803
    %805 = vrot.lane.b32.xlu0 %v386, 64
    %v806 = vpop.permute.xlu0 %805
    %v808 = vsel %vm387, %v804, 0
    %v811 = vsel %vm387, %v806, 0
    %813 = vmatpush.bf16.xpose.msra.mxu0 0
    %814 = vmatpush.bf16.xpose.msra.mxu0 0
    %815 = vmatpush.bf16.xpose.msra.mxu0 0
    %816 = vmatpush.bf16.xpose.msra.mxu0 0
    %817 = vmatpush.bf16.xpose.msra.mxu0 0
    %818 = vmatpush.bf16.xpose.msra.mxu0 0
    %819 = vmatpush.bf16.xpose.msra.mxu0 0
    %820 = vmatpush.bf16.xpose.msra.mxu0 %v811
    %821 = vmatmul.bf16.gmra.mxu0 %v808
    %v822 = vpop.f32.mrf.mxu0
    %v823 = vadd.f32 %v158, %v822
    %v824 = vpop.f32.mrf.mxu0
    %v825 = vadd.f32 %v159, %v824
    %826 = vdwg.mxu0
    %v827 = vsel %vm387, %v823, -inf
    %828 = vmax.xlane.f32.xlu0 %v827
    %v829 = vpop.xlane.xlu0 %828
    %v830 = vsel %vm387, %v825, -inf
    %831 = vmax.xlane.f32.xlu0 %v830
    %v832 = vpop.xlane.xlu0 %831
    %v833 = vsub.f32 %v823, %v829
    %v834 = vsub.f32 %v825, %v832
    %v835 = vmul.f32 %v833, 1.442695
    %v836 = vpow.pop %v835
    %v837 = vmul.f32 %v834, 1.442695
    %v838 = vpow.pop %v837
    %v839 = vsel %vm387, %v836, 0.0
    %840 = vadd.xlane.f32.xlu0 %v839
    %v841 = vpop.xlane.xlu0 %840
    %v842 = vsel %vm387, %v838, 0.0
    %843 = vadd.xlane.f32.xlu0 %v842
    %v844 = vpop.xlane.xlu0 %843
    %v845 = vrcp.pop %v841
    %v846 = vmul.f32 %v841, %v845
    %v847 = vsub.f32 1.0, %v846
    %v848 = vmul.f32 %v845, %v847
    %v849 = vadd.f32 %v845, %v848
    %vm850 = vweird.f32 %v841
    %vm851 = vweird.f32 %v845
    %vm852 = vmor %vm850, %vm851
    %v853 = vsel %vm852, %v845, %v849
    %v854 = vand.u32 2147483647, %v841
    %vm855 = vcmp.eq.f32.partialorder %v854, 8.507059e+37
    %v856 = vand.u32 %v841, 2147483648
    %v857 = vor.u32 1.1754944e-38, %v856
    %v858 = vsel %vm855, %v857, %v853
    %v859 = vmul.f32 %v836, %v858
    %v860 = vrcp.pop %v844
    %v861 = vmul.f32 %v844, %v860
    %v862 = vsub.f32 1.0, %v861
    %v863 = vmul.f32 %v860, %v862
    %v864 = vadd.f32 %v860, %v863
    %vm865 = vweird.f32 %v844
    %vm866 = vweird.f32 %v860
    %vm867 = vmor %vm865, %vm866
    %v868 = vsel %vm867, %v860, %v864
    %v869 = vand.u32 2147483647, %v844
    %vm870 = vcmp.eq.f32.partialorder %v869, 8.507059e+37
    %v871 = vand.u32 %v844, 2147483648
    %v872 = vor.u32 1.1754944e-38, %v871
    %v873 = vsel %vm870, %v872, %v868
    %v874 = vmul.f32 %v838, %v873
    %v875 = vpack.c.bf16 %v874, %v859
    %876 = vrot.lane.b32.xlu0 %v461, 64
    %v877 = vpop.permute.xlu0 %876
    %v880 = vsel %vm387, %v875, 0
    %882 = vmatpush.bf16.msra.mxu0 0
    %883 = vmatpush.bf16.msra.mxu0 0
    %884 = vmatpush.bf16.msra.mxu0 0
    %885 = vmatpush.bf16.msra.mxu0 0
    %886 = vmatpush.bf16.msra.mxu0 0
    %887 = vmatpush.bf16.msra.mxu0 0
    %888 = vmatpush.bf16.msra.mxu0 0
    %889 = vmatpush.bf16.msra.mxu0 %v877
    %890 = vmatmul.bf16.gmra.mxu0 %v880
    %v891 = vpop.f32.mrf.mxu0
    %v892 = vadd.f32 0.0, %v891
    %v893 = vpop.f32.mrf.mxu0
    %v894 = vadd.f32 0.0, %v893
    %895 = vdwg.mxu0
    %v896 = vpack.c.bf16 %v892, %v892
    %v897 = vpack.c.bf16 %v894, %v894
    %900 = vrot.lane.b32.xlu0 %v896, 64
    %v901 = vpop.permute.xlu0 %900
    %902 = vrot.lane.b32.xlu0 %v897, 64
    %v903 = vpop.permute.xlu0 %902
    %vm906 = vcmask 650752
    %907 = vst.msk [vmem:[#allocation2] sm:$0xf] %vm906, %v901
    %908 = vst.msk [vmem:[#allocation2 + $0x4] sm:$0xf] %vm906, %v903
    %909 = vrot.lane.b32.xlu0 %v381, 48
    %v910 = vpop.permute.xlu0 %909
    %911 = vrot.lane.b32.xlu0 %v386, 48
    %v912 = vpop.permute.xlu0 %911
    %v914 = vsel %vm387, %v910, 0
    %v917 = vsel %vm387, %v912, 0
    %919 = vmatpush.bf16.xpose.msra.mxu0 0
    %920 = vmatpush.bf16.xpose.msra.mxu0 0
    %921 = vmatpush.bf16.xpose.msra.mxu0 0
    %922 = vmatpush.bf16.xpose.msra.mxu0 0
    %923 = vmatpush.bf16.xpose.msra.mxu0 0
    %924 = vmatpush.bf16.xpose.msra.mxu0 0
    %925 = vmatpush.bf16.xpose.msra.mxu0 0
    %926 = vmatpush.bf16.xpose.msra.mxu0 %v917
    %927 = vmatmul.bf16.gmra.mxu0 %v914
    %v928 = vpop.f32.mrf.mxu0
    %v929 = vadd.f32 %v158, %v928
    %v930 = vpop.f32.mrf.mxu0
    %v931 = vadd.f32 %v159, %v930
    %932 = vdwg.mxu0
    %v933 = vsel %vm387, %v929, -inf
    %934 = vmax.xlane.f32.xlu0 %v933
    %v935 = vpop.xlane.xlu0 %934
    %v936 = vsel %vm387, %v931, -inf
    %937 = vmax.xlane.f32.xlu0 %v936
    %v938 = vpop.xlane.xlu0 %937
    %v939 = vsub.f32 %v929, %v935
    %v940 = vsub.f32 %v931, %v938
    %v941 = vmul.f32 %v939, 1.442695
    %v942 = vpow.pop %v941
    %v943 = vmul.f32 %v940, 1.442695
    %v944 = vpow.pop %v943
    %v945 = vsel %vm387, %v942, 0.0
    %946 = vadd.xlane.f32.xlu0 %v945
    %v947 = vpop.xlane.xlu0 %946
    %v948 = vsel %vm387, %v944, 0.0
    %949 = vadd.xlane.f32.xlu0 %v948
    %v950 = vpop.xlane.xlu0 %949
    %v951 = vrcp.pop %v947
    %v952 = vmul.f32 %v947, %v951
    %v953 = vsub.f32 1.0, %v952
    %v954 = vmul.f32 %v951, %v953
    %v955 = vadd.f32 %v951, %v954
    %vm956 = vweird.f32 %v947
    %vm957 = vweird.f32 %v951
    %vm958 = vmor %vm956, %vm957
    %v959 = vsel %vm958, %v951, %v955
    %v960 = vand.u32 2147483647, %v947
    %vm961 = vcmp.eq.f32.partialorder %v960, 8.507059e+37
    %v962 = vand.u32 %v947, 2147483648
    %v963 = vor.u32 1.1754944e-38, %v962
    %v964 = vsel %vm961, %v963, %v959
    %v965 = vmul.f32 %v942, %v964
    %v966 = vrcp.pop %v950
    %v967 = vmul.f32 %v950, %v966
    %v968 = vsub.f32 1.0, %v967
    %v969 = vmul.f32 %v966, %v968
    %v970 = vadd.f32 %v966, %v969
    %vm971 = vweird.f32 %v950
    %vm972 = vweird.f32 %v966
    %vm973 = vmor %vm971, %vm972
    %v974 = vsel %vm973, %v966, %v970
    %v975 = vand.u32 2147483647, %v950
    %vm976 = vcmp.eq.f32.partialorder %v975, 8.507059e+37
    %v977 = vand.u32 %v950, 2147483648
    %v978 = vor.u32 1.1754944e-38, %v977
    %v979 = vsel %vm976, %v978, %v974
    %v980 = vmul.f32 %v944, %v979
    %v981 = vpack.c.bf16 %v980, %v965
    %982 = vrot.lane.b32.xlu0 %v461, 48
    %v983 = vpop.permute.xlu0 %982
    %v986 = vsel %vm387, %v981, 0
    %988 = vmatpush.bf16.msra.mxu0 0
    %989 = vmatpush.bf16.msra.mxu0 0
    %990 = vmatpush.bf16.msra.mxu0 0
    %991 = vmatpush.bf16.msra.mxu0 0
    %992 = vmatpush.bf16.msra.mxu0 0
    %993 = vmatpush.bf16.msra.mxu0 0
    %994 = vmatpush.bf16.msra.mxu0 0
    %995 = vmatpush.bf16.msra.mxu0 %v983
    %996 = vmatmul.bf16.gmra.mxu0 %v986
    %v997 = vpop.f32.mrf.mxu0
    %v998 = vadd.f32 0.0, %v997
    %v999 = vpop.f32.mrf.mxu0
    %v1000 = vadd.f32 0.0, %v999
    %1001 = vdwg.mxu0
    %v1002 = vpack.c.bf16 %v998, %v998
    %v1003 = vpack.c.bf16 %v1000, %v1000
    %1006 = vrot.lane.b32.xlu0 %v1002, 80
    %v1007 = vpop.permute.xlu0 %1006
    %1008 = vrot.lane.b32.xlu0 %v1003, 80
    %v1009 = vpop.permute.xlu0 %1008
    %vm1012 = vcmask 781952
    %1013 = vst.msk [vmem:[#allocation2] sm:$0xf] %vm1012, %v1007
    %1014 = vst.msk [vmem:[#allocation2 + $0x4] sm:$0xf] %vm1012, %v1009
    %1015 = vrot.lane.b32.xlu0 %v381, 32
    %v1016 = vpop.permute.xlu0 %1015
    %1017 = vrot.lane.b32.xlu0 %v386, 32
    %v1018 = vpop.permute.xlu0 %1017
    %v1020 = vsel %vm387, %v1016, 0
    %v1023 = vsel %vm387, %v1018, 0
    %1025 = vmatpush.bf16.xpose.msra.mxu0 0
    %1026 = vmatpush.bf16.xpose.msra.mxu0 0
    %1027 = vmatpush.bf16.xpose.msra.mxu0 0
    %1028 = vmatpush.bf16.xpose.msra.mxu0 0
    %1029 = vmatpush.bf16.xpose.msra.mxu0 0
    %1030 = vmatpush.bf16.xpose.msra.mxu0 0
    %1031 = vmatpush.bf16.xpose.msra.mxu0 0
    %1032 = vmatpush.bf16.xpose.msra.mxu0 %v1023
    %1033 = vmatmul.bf16.gmra.mxu0 %v1020
    %v1034 = vpop.f32.mrf.mxu0
    %v1035 = vadd.f32 %v158, %v1034
    %v1036 = vpop.f32.mrf.mxu0
    %v1037 = vadd.f32 %v159, %v1036
    %1038 = vdwg.mxu0
    %v1039 = vsel %vm387, %v1035, -inf
    %1040 = vmax.xlane.f32.xlu0 %v1039
    %v1041 = vpop.xlane.xlu0 %1040
    %v1042 = vsel %vm387, %v1037, -inf
    %1043 = vmax.xlane.f32.xlu0 %v1042
    %v1044 = vpop.xlane.xlu0 %1043
    %v1045 = vsub.f32 %v1035, %v1041
    %v1046 = vsub.f32 %v1037, %v1044
    %v1047 = vmul.f32 %v1045, 1.442695
    %v1048 = vpow.pop %v1047
    %v1049 = vmul.f32 %v1046, 1.442695
    %v1050 = vpow.pop %v1049
    %v1051 = vsel %vm387, %v1048, 0.0
    %1052 = vadd.xlane.f32.xlu0 %v1051
    %v1053 = vpop.xlane.xlu0 %1052
    %v1054 = vsel %vm387, %v1050, 0.0
    %1055 = vadd.xlane.f32.xlu0 %v1054
    %v1056 = vpop.xlane.xlu0 %1055
    %v1057 = vrcp.pop %v1053
    %v1058 = vmul.f32 %v1053, %v1057
    %v1059 = vsub.f32 1.0, %v1058
    %v1060 = vmul.f32 %v1057, %v1059
    %v1061 = vadd.f32 %v1057, %v1060
    %vm1062 = vweird.f32 %v1053
    %vm1063 = vweird.f32 %v1057
    %vm1064 = vmor %vm1062, %vm1063
    %v1065 = vsel %vm1064, %v1057, %v1061
    %v1066 = vand.u32 2147483647, %v1053
    %vm1067 = vcmp.eq.f32.partialorder %v1066, 8.507059e+37
    %v1068 = vand.u32 %v1053, 2147483648
    %v1069 = vor.u32 1.1754944e-38, %v1068
    %v1070 = vsel %vm1067, %v1069, %v1065
    %v1071 = vmul.f32 %v1048, %v1070
    %v1072 = vrcp.pop %v1056
    %v1073 = vmul.f32 %v1056, %v1072
    %v1074 = vsub.f32 1.0, %v1073
    %v1075 = vmul.f32 %v1072, %v1074
    %v1076 = vadd.f32 %v1072, %v1075
    %vm1077 = vweird.f32 %v1056
    %vm1078 = vweird.f32 %v1072
    %vm1079 = vmor %vm1077, %vm1078
    %v1080 = vsel %vm1079, %v1072, %v1076
    %v1081 = vand.u32 2147483647, %v1056
    %vm1082 = vcmp.eq.f32.partialorder %v1081, 8.507059e+37
    %v1083 = vand.u32 %v1056, 2147483648
    %v1084 = vor.u32 1.1754944e-38, %v1083
    %v1085 = vsel %vm1082, %v1084, %v1080
    %v1086 = vmul.f32 %v1050, %v1085
    %v1087 = vpack.c.bf16 %v1086, %v1071
    %1088 = vrot.lane.b32.xlu0 %v461, 32
    %v1089 = vpop.permute.xlu0 %1088
    %v1092 = vsel %vm387, %v1087, 0
    %1094 = vmatpush.bf16.msra.mxu0 0
    %1095 = vmatpush.bf16.msra.mxu0 0
    %1096 = vmatpush.bf16.msra.mxu0 0
    %1097 = vmatpush.bf16.msra.mxu0 0
    %1098 = vmatpush.bf16.msra.mxu0 0
    %1099 = vmatpush.bf16.msra.mxu0 0
    %1100 = vmatpush.bf16.msra.mxu0 0
    %1101 = vmatpush.bf16.msra.mxu0 %v1089
    %1102 = vmatmul.bf16.gmra.mxu0 %v1092
    %v1103 = vpop.f32.mrf.mxu0
    %v1104 = vadd.f32 0.0, %v1103
    %v1105 = vpop.f32.mrf.mxu0
    %v1106 = vadd.f32 0.0, %v1105
    %1107 = vdwg.mxu0
    %v1108 = vpack.c.bf16 %v1104, %v1104
    %v1109 = vpack.c.bf16 %v1106, %v1106
    %1112 = vrot.lane.b32.xlu0 %v1108, 96
    %v1113 = vpop.permute.xlu0 %1112
    %1114 = vrot.lane.b32.xlu0 %v1109, 96
    %v1115 = vpop.permute.xlu0 %1114
    %vm1118 = vcmask 913152
    %1119 = vst.msk [vmem:[#allocation2] sm:$0xf] %vm1118, %v1113
    %1120 = vst.msk [vmem:[#allocation2 + $0x4] sm:$0xf] %vm1118, %v1115
    %1121 = vrot.lane.b32.xlu0 %v381, 16
    %v1122 = vpop.permute.xlu0 %1121
    %1123 = vrot.lane.b32.xlu0 %v386, 16
    %v1124 = vpop.permute.xlu0 %1123
    %v1126 = vsel %vm387, %v1122, 0
    %v1129 = vsel %vm387, %v1124, 0
    %1131 = vmatpush.bf16.xpose.msra.mxu0 0
    %1132 = vmatpush.bf16.xpose.msra.mxu0 0
    %1133 = vmatpush.bf16.xpose.msra.mxu0 0
    %1134 = vmatpush.bf16.xpose.msra.mxu0 0
    %1135 = vmatpush.bf16.xpose.msra.mxu0 0
    %1136 = vmatpush.bf16.xpose.msra.mxu0 0
    %1137 = vmatpush.bf16.xpose.msra.mxu0 0
    %1138 = vmatpush.bf16.xpose.msra.mxu0 %v1129
    %1139 = vmatmul.bf16.gmra.mxu0 %v1126
    %v1140 = vpop.f32.mrf.mxu0
    %v1141 = vadd.f32 %v158, %v1140
    %v1142 = vpop.f32.mrf.mxu0
    %v1143 = vadd.f32 %v159, %v1142
    %1144 = vdwg.mxu0
    %v1145 = vsel %vm387, %v1141, -inf
    %1146 = vmax.xlane.f32.xlu0 %v1145
    %v1147 = vpop.xlane.xlu0 %1146
    %v1148 = vsel %vm387, %v1143, -inf
    %1149 = vmax.xlane.f32.xlu0 %v1148
    %v1150 = vpop.xlane.xlu0 %1149
    %v1151 = vsub.f32 %v1141, %v1147
    %v1152 = vsub.f32 %v1143, %v1150
    %v1153 = vmul.f32 %v1151, 1.442695
    %v1154 = vpow.pop %v1153
    %v1155 = vmul.f32 %v1152, 1.442695
    %v1156 = vpow.pop %v1155
    %v1157 = vsel %vm387, %v1154, 0.0
    %1158 = vadd.xlane.f32.xlu0 %v1157
    %v1159 = vpop.xlane.xlu0 %1158
    %v1160 = vsel %vm387, %v1156, 0.0
    %1161 = vadd.xlane.f32.xlu0 %v1160
    %v1162 = vpop.xlane.xlu0 %1161
    %v1163 = vrcp.pop %v1159
    %v1164 = vmul.f32 %v1159, %v1163
    %v1165 = vsub.f32 1.0, %v1164
    %v1166 = vmul.f32 %v1163, %v1165
    %v1167 = vadd.f32 %v1163, %v1166
    %vm1168 = vweird.f32 %v1159
    %vm1169 = vweird.f32 %v1163
    %vm1170 = vmor %vm1168, %vm1169
    %v1171 = vsel %vm1170, %v1163, %v1167
    %v1172 = vand.u32 2147483647, %v1159
    %vm1173 = vcmp.eq.f32.partialorder %v1172, 8.507059e+37
    %v1174 = vand.u32 %v1159, 2147483648
    %v1175 = vor.u32 1.1754944e-38, %v1174
    %v1176 = vsel %vm1173, %v1175, %v1171
    %v1177 = vmul.f32 %v1154, %v1176
    %v1178 = vrcp.pop %v1162
    %v1179 = vmul.f32 %v1162, %v1178
    %v1180 = vsub.f32 1.0, %v1179
    %v1181 = vmul.f32 %v1178, %v1180
    %v1182 = vadd.f32 %v1178, %v1181
    %vm1183 = vweird.f32 %v1162
    %vm1184 = vweird.f32 %v1178
    %vm1185 = vmor %vm1183, %vm1184
    %v1186 = vsel %vm1185, %v1178, %v1182
    %v1187 = vand.u32 2147483647, %v1162
    %vm1188 = vcmp.eq.f32.partialorder %v1187, 8.507059e+37
    %v1189 = vand.u32 %v1162, 2147483648
    %v1190 = vor.u32 1.1754944e-38, %v1189
    %v1191 = vsel %vm1188, %v1190, %v1186
    %v1192 = vmul.f32 %v1156, %v1191
    %v1193 = vpack.c.bf16 %v1192, %v1177
    %1194 = vrot.lane.b32.xlu0 %v461, 16
    %v1195 = vpop.permute.xlu0 %1194
    %v1198 = vsel %vm387, %v1193, 0
    %1200 = vmatpush.bf16.msra.mxu0 0
    %1201 = vmatpush.bf16.msra.mxu0 0
    %1202 = vmatpush.bf16.msra.mxu0 0
    %1203 = vmatpush.bf16.msra.mxu0 0
    %1204 = vmatpush.bf16.msra.mxu0 0
    %1205 = vmatpush.bf16.msra.mxu0 0
    %1206 = vmatpush.bf16.msra.mxu0 0
    %1207 = vmatpush.bf16.msra.mxu0 %v1195
    %1208 = vmatmul.bf16.gmra.mxu0 %v1198
    %v1209 = vpop.f32.mrf.mxu0
    %v1210 = vadd.f32 0.0, %v1209
    %v1211 = vpop.f32.mrf.mxu0
    %v1212 = vadd.f32 0.0, %v1211
    %1213 = vdwg.mxu0
    %v1214 = vpack.c.bf16 %v1210, %v1210
    %v1215 = vpack.c.bf16 %v1212, %v1212
    %1218 = vrot.lane.b32.xlu0 %v1214, 112
    %v1219 = vpop.permute.xlu0 %1218
    %1220 = vrot.lane.b32.xlu0 %v1215, 112
    %v1221 = vpop.permute.xlu0 %1220
    %vm1224 = vcmask 1044352
    %1225 = vst.msk [vmem:[#allocation2] sm:$0xf] %vm1224, %v1219
    %1226 = vst.msk [vmem:[#allocation2 + $0x4] sm:$0xf] %vm1224, %v1221
    %v1227 = vld [vmem:[#allocation2] sm:$0xf]
    %v1228 = vld [vmem:[#allocation2 + $0x4] sm:$0xf]
    %v1229 = vld [vmem:[#allocation11] sm:$0xf]
    %v1230 = vld [vmem:[#allocation11 + $0x4] sm:$0xf]
    %v1231 = vld [vmem:[#allocation11 + $0x8] sm:$0xf]
    %v1232 = vld [vmem:[#allocation11 + $0xc] sm:$0xf]
    %v1233 = vld [vmem:[#allocation11 + $0x10] sm:$0xf]
    %v1234 = vld [vmem:[#allocation11 + $0x14] sm:$0xf]
    %v1235 = vld [vmem:[#allocation11 + $0x18] sm:$0xf]
    %v1236 = vld [vmem:[#allocation11 + $0x1c] sm:$0xf]
    %v1237 = vld [vmem:[#allocation11 + $0x20] sm:$0xf]
    %v1238 = vld [vmem:[#allocation11 + $0x24] sm:$0xf]
    %v1239 = vld [vmem:[#allocation11 + $0x28] sm:$0xf]
    %v1240 = vld [vmem:[#allocation11 + $0x2c] sm:$0xf]
    %v1241 = vld [vmem:[#allocation11 + $0x30] sm:$0xf]
    %v1242 = vld [vmem:[#allocation11 + $0x34] sm:$0xf]
    %v1243 = vld [vmem:[#allocation11 + $0x38] sm:$0xf]
    %v1244 = vld [vmem:[#allocation11 + $0x3c] sm:$0xf]
    %v1245 = vld [vmem:[%s5] sm:$0x1]
    %v1247 = vperm.slane %v1245, 0
    %v1251 = vunpack.c.l.b16 %v1227
    %v1252 = vunpack.c.l.b16 %v1228
    %v1253 = vpack.c.b16 %v1252, %v1251
    %v1271 = vunpack.c.l.b16 %v1229
    %v1272 = vunpack.c.l.b16 %v1230
    %v1273 = vunpack.c.l.b16 %v1231
    %v1274 = vunpack.c.l.b16 %v1232
    %v1275 = vunpack.c.l.b16 %v1233
    %v1276 = vunpack.c.l.b16 %v1234
    %v1277 = vunpack.c.l.b16 %v1235
    %v1278 = vunpack.c.l.b16 %v1236
    %v1279 = vunpack.c.l.b16 %v1237
    %v1280 = vunpack.c.l.b16 %v1238
    %v1281 = vunpack.c.l.b16 %v1239
    %v1282 = vunpack.c.l.b16 %v1240
    %v1283 = vunpack.c.l.b16 %v1241
    %v1284 = vunpack.c.l.b16 %v1242
    %v1285 = vunpack.c.l.b16 %v1243
    %v1286 = vunpack.c.l.b16 %v1244
    %v1287 = vpack.c.b16 %v1272, %v1271
    %v1288 = vpack.c.b16 %v1274, %v1273
    %v1289 = vpack.c.b16 %v1276, %v1275
    %v1290 = vpack.c.b16 %v1278, %v1277
    %v1291 = vpack.c.b16 %v1280, %v1279
    %v1292 = vpack.c.b16 %v1282, %v1281
    %v1293 = vpack.c.b16 %v1284, %v1283
    %v1294 = vpack.c.b16 %v1286, %v1285
    %1303 = vmatpush.bf16.msra.mxu0 %v1294
    %1304 = vmatpush.bf16.msra.mxu0 %v1293
    %1305 = vmatpush.bf16.msra.mxu0 %v1292
    %1306 = vmatpush.bf16.msra.mxu0 %v1291
    %1307 = vmatpush.bf16.msra.mxu0 %v1290
    %1308 = vmatpush.bf16.msra.mxu0 %v1289
    %1309 = vmatpush.bf16.msra.mxu0 %v1288
    %1310 = vmatpush.bf16.msra.mxu0 %v1287
    %1311 = vmatmul.bf16.gmra.mxu0 %v1253
    %v1312 = vpop.f32.mrf.mxu0
    %v1313 = vadd.f32 %v1247, %v1312
    %v1314 = vpop.f32.mrf.mxu0
    %v1315 = vadd.f32 %v1247, %v1314
    %1316 = vdwg.mxu0
    %v1317 = vadd.f32 %v156, %v1313
    %v1318 = vadd.f32 %v157, %v1315
    %1319 = vadd.xlane.f32.xlu0 %v1317
    %v1320 = vpop.xlane.xlu0 %1319
    %1321 = vadd.xlane.f32.xlu0 %v1318
    %v1322 = vpop.xlane.xlu0 %1321
    %v1323 = vrcp.pop 128.0
    %v1324 = vmul.f32 128.0, %v1323
    %v1325 = vsub.f32 1.0, %v1324
    %v1326 = vmul.f32 %v1323, %v1325
    %v1327 = vadd.f32 %v1323, %v1326
    %vm1328 = vweird.f32 %v1323
    %v1329 = vsel %vm1328, %v1323, %v1327
    %v1330 = vmul.f32 %v1320, %v1329
    %v1331 = vmul.f32 %v1322, %v1329
    %v1332 = vsub.f32 %v1317, %v1330
    %v1333 = vsub.f32 %v1318, %v1331
    %v1334 = vmul.f32 %v1332, %v1332
    %v1335 = vmul.f32 %v1333, %v1333
    %1336 = vadd.xlane.f32.xlu0 %v1334
    %v1337 = vpop.xlane.xlu0 %1336
    %1338 = vadd.xlane.f32.xlu0 %v1335
    %v1339 = vpop.xlane.xlu0 %1338
    %v1340 = vmul.f32 %v1337, %v1329
    %v1341 = vmul.f32 %v1339, %v1329
    %v1342 = vadd.f32 %v1340, 1e-05
    %v1343 = vadd.f32 %v1341, 1e-05
    %v1344 = vrsqrt.pop %v1342
    %v1345 = vmul.f32 %v1344, %v1342
    %v1346 = vmul.f32 %v1345, %v1344
    %v1347 = vmul.f32 0.5, %v1346
    %v1348 = vsub.f32 1.5, %v1347
    %v1349 = vmul.f32 %v1344, %v1348
    %vm1350 = vweird.f32 %v1342
    %vm1351 = vweird.f32 %v1344
    %vm1352 = vmor %vm1350, %vm1351
    %v1353 = vsel %vm1352, %v1344, %v1349
    %v1354 = vrsqrt.pop %v1343
    %v1355 = vmul.f32 %v1354, %v1343
    %v1356 = vmul.f32 %v1355, %v1354
    %v1357 = vmul.f32 0.5, %v1356
    %v1358 = vsub.f32 1.5, %v1357
    %v1359 = vmul.f32 %v1354, %v1358
    %vm1360 = vweird.f32 %v1343
    %vm1361 = vweird.f32 %v1354
    %vm1362 = vmor %vm1360, %vm1361
    %v1363 = vsel %vm1362, %v1354, %v1359
    %v1364 = vmul.f32 %v1332, %v1353
    %v1365 = vmul.f32 %v1333, %v1363
    %v1366 = vld [vmem:[%s10] sm:$0x1]
    %v1368 = vperm.slane %v1366, 0
    %v1370 = vmul.f32 %v1364, %v1368
    %v1371 = vmul.f32 %v1365, %v1368
    %v1372 = vld [vmem:[%s11] sm:$0x1]
    %v1374 = vperm.slane %v1372, 0
    %v1376 = vadd.f32 %v1370, %v1374
    %v1377 = vadd.f32 %v1371, %v1374
    %v1378 = vpack.c.bf16 %v1377, %v1376
    %v1379 = vld [vmem:[#allocation12] sm:$0xff]
    %v1380 = vld [vmem:[#allocation12 + $0x8] sm:$0xff]
    %v1381 = vld [vmem:[#allocation12 + $0x10] sm:$0xff]
    %v1382 = vld [vmem:[#allocation12 + $0x18] sm:$0xff]
    %v1383 = vld [vmem:[#allocation12 + $0x20] sm:$0xff]
    %v1384 = vld [vmem:[#allocation12 + $0x28] sm:$0xff]
    %v1385 = vld [vmem:[#allocation12 + $0x30] sm:$0xff]
    %v1386 = vld [vmem:[#allocation12 + $0x38] sm:$0xff]
    %v1387 = vld [vmem:[#allocation12 + $0x40] sm:$0xff]
    %v1388 = vld [vmem:[#allocation12 + $0x48] sm:$0xff]
    %v1389 = vld [vmem:[#allocation12 + $0x50] sm:$0xff]
    %v1390 = vld [vmem:[#allocation12 + $0x58] sm:$0xff]
    %v1391 = vld [vmem:[#allocation12 + $0x60] sm:$0xff]
    %v1392 = vld [vmem:[#allocation12 + $0x68] sm:$0xff]
    %v1393 = vld [vmem:[#allocation12 + $0x70] sm:$0xff]
    %v1394 = vld [vmem:[#allocation12 + $0x78] sm:$0xff]
    %v1395 = vld [vmem:[#allocation12 + $0x80] sm:$0xff]
    %v1396 = vld [vmem:[#allocation12 + $0x88] sm:$0xff]
    %v1397 = vld [vmem:[#allocation12 + $0x90] sm:$0xff]
    %v1398 = vld [vmem:[#allocation12 + $0x98] sm:$0xff]
    %v1399 = vld [vmem:[#allocation12 + $0xa0] sm:$0xff]
    %v1400 = vld [vmem:[#allocation12 + $0xa8] sm:$0xff]
    %v1401 = vld [vmem:[#allocation12 + $0xb0] sm:$0xff]
    %v1402 = vld [vmem:[#allocation12 + $0xb8] sm:$0xff]
    %v1403 = vld [vmem:[#allocation12 + $0xc0] sm:$0xff]
    %v1404 = vld [vmem:[#allocation12 + $0xc8] sm:$0xff]
    %v1405 = vld [vmem:[#allocation12 + $0xd0] sm:$0xff]
    %v1406 = vld [vmem:[#allocation12 + $0xd8] sm:$0xff]
    %v1407 = vld [vmem:[#allocation12 + $0xe0] sm:$0xff]
    %v1408 = vld [vmem:[#allocation12 + $0xe8] sm:$0xff]
    %v1409 = vld [vmem:[#allocation12 + $0xf0] sm:$0xff]
    %v1410 = vld [vmem:[#allocation12 + $0xf8] sm:$0xff]
    %v1411 = vld [vmem:[%s7] sm:$0xf]
    %v1413 = vperm.slane %v1411, 0
    %v1414 = vperm.slane %v1411, 1
    %v1415 = vperm.slane %v1411, 2
    %v1416 = vperm.slane %v1411, 3
    %v1453 = vunpack.c.l.b16 %v1379
    %v1454 = vunpack.c.h.b16 %v1379
    %v1455 = vunpack.c.l.b16 %v1380
    %v1456 = vunpack.c.h.b16 %v1380
    %v1457 = vunpack.c.l.b16 %v1381
    %v1458 = vunpack.c.h.b16 %v1381
    %v1459 = vunpack.c.l.b16 %v1382
    %v1460 = vunpack.c.h.b16 %v1382
    %v1461 = vunpack.c.l.b16 %v1383
    %v1462 = vunpack.c.h.b16 %v1383
    %v1463 = vunpack.c.l.b16 %v1384
    %v1464 = vunpack.c.h.b16 %v1384
    %v1465 = vunpack.c.l.b16 %v1385
    %v1466 = vunpack.c.h.b16 %v1385
    %v1467 = vunpack.c.l.b16 %v1386
    %v1468 = vunpack.c.h.b16 %v1386
    %v1469 = vunpack.c.l.b16 %v1387
    %v1470 = vunpack.c.h.b16 %v1387
    %v1471 = vunpack.c.l.b16 %v1388
    %v1472 = vunpack.c.h.b16 %v1388
    %v1473 = vunpack.c.l.b16 %v1389
    %v1474 = vunpack.c.h.b16 %v1389
    %v1475 = vunpack.c.l.b16 %v1390
    %v1476 = vunpack.c.h.b16 %v1390
    %v1477 = vunpack.c.l.b16 %v1391
    %v1478 = vunpack.c.h.b16 %v1391
    %v1479 = vunpack.c.l.b16 %v1392
    %v1480 = vunpack.c.h.b16 %v1392
    %v1481 = vunpack.c.l.b16 %v1393
    %v1482 = vunpack.c.h.b16 %v1393
    %v1483 = vunpack.c.l.b16 %v1394
    %v1484 = vunpack.c.h.b16 %v1394
    %v1485 = vunpack.c.l.b16 %v1395
    %v1486 = vunpack.c.h.b16 %v1395
    %v1487 = vunpack.c.l.b16 %v1396
    %v1488 = vunpack.c.h.b16 %v1396
    %v1489 = vunpack.c.l.b16 %v1397
    %v1490 = vunpack.c.h.b16 %v1397
    %v1491 = vunpack.c.l.b16 %v1398
    %v1492 = vunpack.c.h.b16 %v1398
    %v1493 = vunpack.c.l.b16 %v1399
    %v1494 = vunpack.c.h.b16 %v1399
    %v1495 = vunpack.c.l.b16 %v1400
    %v1496 = vunpack.c.h.b16 %v1400
    %v1497 = vunpack.c.l.b16 %v1401
    %v1498 = vunpack.c.h.b16 %v1401
    %v1499 = vunpack.c.l.b16 %v1402
    %v1500 = vunpack.c.h.b16 %v1402
    %v1501 = vunpack.c.l.b16 %v1403
    %v1502 = vunpack.c.h.b16 %v1403
    %v1503 = vunpack.c.l.b16 %v1404
    %v1504 = vunpack.c.h.b16 %v1404
    %v1505 = vunpack.c.l.b16 %v1405
    %v1506 = vunpack.c.h.b16 %v1405
    %v1507 = vunpack.c.l.b16 %v1406
    %v1508 = vunpack.c.h.b16 %v1406
    %v1509 = vunpack.c.l.b16 %v1407
    %v1510 = vunpack.c.h.b16 %v1407
    %v1511 = vunpack.c.l.b16 %v1408
    %v1512 = vunpack.c.h.b16 %v1408
    %v1513 = vunpack.c.l.b16 %v1409
    %v1514 = vunpack.c.h.b16 %v1409
    %v1515 = vunpack.c.l.b16 %v1410
    %v1516 = vunpack.c.h.b16 %v1410
    %v1517 = vpack.c.b16 %v1457, %v1453
    %v1518 = vpack.c.b16 %v1458, %v1454
    %v1519 = vpack.c.b16 %v1459, %v1455
    %v1520 = vpack.c.b16 %v1460, %v1456
    %v1521 = vpack.c.b16 %v1465, %v1461
    %v1522 = vpack.c.b16 %v1466, %v1462
    %v1523 = vpack.c.b16 %v1467, %v1463
    %v1524 = vpack.c.b16 %v1468, %v1464
    %v1525 = vpack.c.b16 %v1473, %v1469
    %v1526 = vpack.c.b16 %v1474, %v1470
    %v1527 = vpack.c.b16 %v1475, %v1471
    %v1528 = vpack.c.b16 %v1476, %v1472
    %v1529 = vpack.c.b16 %v1481, %v1477
    %v1530 = vpack.c.b16 %v1482, %v1478
    %v1531 = vpack.c.b16 %v1483, %v1479
    %v1532 = vpack.c.b16 %v1484, %v1480
    %v1533 = vpack.c.b16 %v1489, %v1485
    %v1534 = vpack.c.b16 %v1490, %v1486
    %v1535 = vpack.c.b16 %v1491, %v1487
    %v1536 = vpack.c.b16 %v1492, %v1488
    %v1537 = vpack.c.b16 %v1497, %v1493
    %v1538 = vpack.c.b16 %v1498, %v1494
    %v1539 = vpack.c.b16 %v1499, %v1495
    %v1540 = vpack.c.b16 %v1500, %v1496
    %v1541 = vpack.c.b16 %v1505, %v1501
    %v1542 = vpack.c.b16 %v1506, %v1502
    %v1543 = vpack.c.b16 %v1507, %v1503
    %v1544 = vpack.c.b16 %v1508, %v1504
    %v1545 = vpack.c.b16 %v1513, %v1509
    %v1546 = vpack.c.b16 %v1514, %v1510
    %v1547 = vpack.c.b16 %v1515, %v1511
    %v1548 = vpack.c.b16 %v1516, %v1512
    %1581 = vmatpush.bf16.msra.mxu0 %v1545
    %1582 = vmatpush.bf16.msra.mxu0 %v1541
    %1583 = vmatpush.bf16.msra.mxu0 %v1537
    %1584 = vmatpush.bf16.msra.mxu0 %v1533
    %1585 = vmatpush.bf16.msra.mxu0 %v1529
    %1586 = vmatpush.bf16.msra.mxu0 %v1525
    %1587 = vmatpush.bf16.msra.mxu0 %v1521
    %1588 = vmatpush.bf16.msra.mxu0 %v1517
    %1589 = vmatmul.bf16.gmra.mxu0 %v1378
    %v1590 = vpop.f32.mrf.mxu0
    %v1591 = vadd.f32 %v1413, %v1590
    %v1592 = vpop.f32.mrf.mxu0
    %v1593 = vadd.f32 %v1413, %v1592
    %1594 = vdwg.mxu0
    %1595 = vmatpush.bf16.msra.mxu0 %v1546
    %1596 = vmatpush.bf16.msra.mxu0 %v1542
    %1597 = vmatpush.bf16.msra.mxu0 %v1538
    %1598 = vmatpush.bf16.msra.mxu0 %v1534
    %1599 = vmatpush.bf16.msra.mxu0 %v1530
    %1600 = vmatpush.bf16.msra.mxu0 %v1526
    %1601 = vmatpush.bf16.msra.mxu0 %v1522
    %1602 = vmatpush.bf16.msra.mxu0 %v1518
    %1603 = vmatmul.bf16.gmra.mxu0 %v1378
    %v1604 = vpop.f32.mrf.mxu0
    %v1605 = vadd.f32 %v1414, %v1604
    %v1606 = vpop.f32.mrf.mxu0
    %v1607 = vadd.f32 %v1414, %v1606
    %1608 = vdwg.mxu0
    %1609 = vmatpush.bf16.msra.mxu0 %v1547
    %1610 = vmatpush.bf16.msra.mxu0 %v1543
    %1611 = vmatpush.bf16.msra.mxu0 %v1539
    %1612 = vmatpush.bf16.msra.mxu0 %v1535
    %1613 = vmatpush.bf16.msra.mxu0 %v1531
    %1614 = vmatpush.bf16.msra.mxu0 %v1527
    %1615 = vmatpush.bf16.msra.mxu0 %v1523
    %1616 = vmatpush.bf16.msra.mxu0 %v1519
    %1617 = vmatmul.bf16.gmra.mxu0 %v1378
    %v1618 = vpop.f32.mrf.mxu0
    %v1619 = vadd.f32 %v1415, %v1618
    %v1620 = vpop.f32.mrf.mxu0
    %v1621 = vadd.f32 %v1415, %v1620
    %1622 = vdwg.mxu0
    %1623 = vmatpush.bf16.msra.mxu0 %v1548
    %1624 = vmatpush.bf16.msra.mxu0 %v1544
    %1625 = vmatpush.bf16.msra.mxu0 %v1540
    %1626 = vmatpush.bf16.msra.mxu0 %v1536
    %1627 = vmatpush.bf16.msra.mxu0 %v1532
    %1628 = vmatpush.bf16.msra.mxu0 %v1528
    %1629 = vmatpush.bf16.msra.mxu0 %v1524
    %1630 = vmatpush.bf16.msra.mxu0 %v1520
    %1631 = vmatmul.bf16.gmra.mxu0 %v1378
    %v1632 = vpop.f32.mrf.mxu0
    %v1633 = vadd.f32 %v1416, %v1632
    %v1634 = vpop.f32.mrf.mxu0
    %v1635 = vadd.f32 %v1416, %v1634
    %1636 = vdwg.mxu0
    %v1637 = vmax.f32 %v1591, 0.0
    %v1638 = vmax.f32 %v1605, 0.0
    %v1639 = vmax.f32 %v1619, 0.0
    %v1640 = vmax.f32 %v1633, 0.0
    %v1641 = vmax.f32 %v1593, 0.0
    %v1642 = vmax.f32 %v1607, 0.0
    %v1643 = vmax.f32 %v1621, 0.0
    %v1644 = vmax.f32 %v1635, 0.0
    %v1645 = vpack.c.bf16 %v1641, %v1637
    %v1646 = vpack.c.bf16 %v1642, %v1638
    %v1647 = vpack.c.bf16 %v1643, %v1639
    %v1648 = vpack.c.bf16 %v1644, %v1640
    %v1649 = vld [vmem:[#allocation14] sm:$0xf]
    %v1650 = vld [vmem:[#allocation14 + $0x4] sm:$0xf]
    %v1651 = vld [vmem:[#allocation14 + $0x8] sm:$0xf]
    %v1652 = vld [vmem:[#allocation14 + $0xc] sm:$0xf]
    %v1653 = vld [vmem:[#allocation14 + $0x10] sm:$0xf]
    %v1654 = vld [vmem:[#allocation14 + $0x14] sm:$0xf]
    %v1655 = vld [vmem:[#allocation14 + $0x18] sm:$0xf]
    %v1656 = vld [vmem:[#allocation14 + $0x1c] sm:$0xf]
    %v1657 = vld [vmem:[#allocation14 + $0x20] sm:$0xf]
    %v1658 = vld [vmem:[#allocation14 + $0x24] sm:$0xf]
    %v1659 = vld [vmem:[#allocation14 + $0x28] sm:$0xf]
    %v1660 = vld [vmem:[#allocation14 + $0x2c] sm:$0xf]
    %v1661 = vld [vmem:[#allocation14 + $0x30] sm:$0xf]
    %v1662 = vld [vmem:[#allocation14 + $0x34] sm:$0xf]
    %v1663 = vld [vmem:[#allocation14 + $0x38] sm:$0xf]
    %v1664 = vld [vmem:[#allocation14 + $0x3c] sm:$0xf]
    %v1665 = vld [vmem:[#allocation14 + $0x40] sm:$0xf]
    %v1666 = vld [vmem:[#allocation14 + $0x44] sm:$0xf]
    %v1667 = vld [vmem:[#allocation14 + $0x48] sm:$0xf]
    %v1668 = vld [vmem:[#allocation14 + $0x4c] sm:$0xf]
    %v1669 = vld [vmem:[#allocation14 + $0x50] sm:$0xf]
    %v1670 = vld [vmem:[#allocation14 + $0x54] sm:$0xf]
    %v1671 = vld [vmem:[#allocation14 + $0x58] sm:$0xf]
    %v1672 = vld [vmem:[#allocation14 + $0x5c] sm:$0xf]
    %v1673 = vld [vmem:[#allocation14 + $0x60] sm:$0xf]
    %v1674 = vld [vmem:[#allocation14 + $0x64] sm:$0xf]
    %v1675 = vld [vmem:[#allocation14 + $0x68] sm:$0xf]
    %v1676 = vld [vmem:[#allocation14 + $0x6c] sm:$0xf]
    %v1677 = vld [vmem:[#allocation14 + $0x70] sm:$0xf]
    %v1678 = vld [vmem:[#allocation14 + $0x74] sm:$0xf]
    %v1679 = vld [vmem:[#allocation14 + $0x78] sm:$0xf]
    %v1680 = vld [vmem:[#allocation14 + $0x7c] sm:$0xf]
    %v1681 = vld [vmem:[#allocation14 + $0x80] sm:$0xf]
    %v1682 = vld [vmem:[#allocation14 + $0x84] sm:$0xf]
    %v1683 = vld [vmem:[#allocation14 + $0x88] sm:$0xf]
    %v1684 = vld [vmem:[#allocation14 + $0x8c] sm:$0xf]
    %v1685 = vld [vmem:[#allocation14 + $0x90] sm:$0xf]
    %v1686 = vld [vmem:[#allocation14 + $0x94] sm:$0xf]
    %v1687 = vld [vmem:[#allocation14 + $0x98] sm:$0xf]
    %v1688 = vld [vmem:[#allocation14 + $0x9c] sm:$0xf]
    %v1689 = vld [vmem:[#allocation14 + $0xa0] sm:$0xf]
    %v1690 = vld [vmem:[#allocation14 + $0xa4] sm:$0xf]
    %v1691 = vld [vmem:[#allocation14 + $0xa8] sm:$0xf]
    %v1692 = vld [vmem:[#allocation14 + $0xac] sm:$0xf]
    %v1693 = vld [vmem:[#allocation14 + $0xb0] sm:$0xf]
    %v1694 = vld [vmem:[#allocation14 + $0xb4] sm:$0xf]
    %v1695 = vld [vmem:[#allocation14 + $0xb8] sm:$0xf]
    %v1696 = vld [vmem:[#allocation14 + $0xbc] sm:$0xf]
    %v1697 = vld [vmem:[#allocation14 + $0xc0] sm:$0xf]
    %v1698 = vld [vmem:[#allocation14 + $0xc4] sm:$0xf]
    %v1699 = vld [vmem:[#allocation14 + $0xc8] sm:$0xf]
    %v1700 = vld [vmem:[#allocation14 + $0xcc] sm:$0xf]
    %v1701 = vld [vmem:[#allocation14 + $0xd0] sm:$0xf]
    %v1702 = vld [vmem:[#allocation14 + $0xd4] sm:$0xf]
    %v1703 = vld [vmem:[#allocation14 + $0xd8] sm:$0xf]
    %v1704 = vld [vmem:[#allocation14 + $0xdc] sm:$0xf]
    %v1705 = vld [vmem:[#allocation14 + $0xe0] sm:$0xf]
    %v1706 = vld [vmem:[#allocation14 + $0xe4] sm:$0xf]
    %v1707 = vld [vmem:[#allocation14 + $0xe8] sm:$0xf]
    %v1708 = vld [vmem:[#allocation14 + $0xec] sm:$0xf]
    %v1709 = vld [vmem:[#allocation14 + $0xf0] sm:$0xf]
    %v1710 = vld [vmem:[#allocation14 + $0xf4] sm:$0xf]
    %v1711 = vld [vmem:[#allocation14 + $0xf8] sm:$0xf]
    %v1712 = vld [vmem:[#allocation14 + $0xfc] sm:$0xf]
    %v1713 = vld [vmem:[%s9] sm:$0x1]
    %v1715 = vperm.slane %v1713, 0
    %v1781 = vunpack.c.l.b16 %v1649
    %v1782 = vunpack.c.l.b16 %v1650
    %v1783 = vunpack.c.l.b16 %v1651
    %v1784 = vunpack.c.l.b16 %v1652
    %v1785 = vunpack.c.l.b16 %v1653
    %v1786 = vunpack.c.l.b16 %v1654
    %v1787 = vunpack.c.l.b16 %v1655
    %v1788 = vunpack.c.l.b16 %v1656
    %v1789 = vunpack.c.l.b16 %v1657
    %v1790 = vunpack.c.l.b16 %v1658
    %v1791 = vunpack.c.l.b16 %v1659
    %v1792 = vunpack.c.l.b16 %v1660
    %v1793 = vunpack.c.l.b16 %v1661
    %v1794 = vunpack.c.l.b16 %v1662
    %v1795 = vunpack.c.l.b16 %v1663
    %v1796 = vunpack.c.l.b16 %v1664
    %v1797 = vunpack.c.l.b16 %v1665
    %v1798 = vunpack.c.l.b16 %v1666
    %v1799 = vunpack.c.l.b16 %v1667
    %v1800 = vunpack.c.l.b16 %v1668
    %v1801 = vunpack.c.l.b16 %v1669
    %v1802 = vunpack.c.l.b16 %v1670
    %v1803 = vunpack.c.l.b16 %v1671
    %v1804 = vunpack.c.l.b16 %v1672
    %v1805 = vunpack.c.l.b16 %v1673
    %v1806 = vunpack.c.l.b16 %v1674
    %v1807 = vunpack.c.l.b16 %v1675
    %v1808 = vunpack.c.l.b16 %v1676
    %v1809 = vunpack.c.l.b16 %v1677
    %v1810 = vunpack.c.l.b16 %v1678
    %v1811 = vunpack.c.l.b16 %v1679
    %v1812 = vunpack.c.l.b16 %v1680
    %v1813 = vunpack.c.l.b16 %v1681
    %v1814 = vunpack.c.l.b16 %v1682
    %v1815 = vunpack.c.l.b16 %v1683
    %v1816 = vunpack.c.l.b16 %v1684
    %v1817 = vunpack.c.l.b16 %v1685
    %v1818 = vunpack.c.l.b16 %v1686
    %v1819 = vunpack.c.l.b16 %v1687
    %v1820 = vunpack.c.l.b16 %v1688
    %v1821 = vunpack.c.l.b16 %v1689
    %v1822 = vunpack.c.l.b16 %v1690
    %v1823 = vunpack.c.l.b16 %v1691
    %v1824 = vunpack.c.l.b16 %v1692
    %v1825 = vunpack.c.l.b16 %v1693
    %v1826 = vunpack.c.l.b16 %v1694
    %v1827 = vunpack.c.l.b16 %v1695
    %v1828 = vunpack.c.l.b16 %v1696
    %v1829 = vunpack.c.l.b16 %v1697
    %v1830 = vunpack.c.l.b16 %v1698
    %v1831 = vunpack.c.l.b16 %v1699
    %v1832 = vunpack.c.l.b16 %v1700
    %v1833 = vunpack.c.l.b16 %v1701
    %v1834 = vunpack.c.l.b16 %v1702
    %v1835 = vunpack.c.l.b16 %v1703
    %v1836 = vunpack.c.l.b16 %v1704
    %v1837 = vunpack.c.l.b16 %v1705
    %v1838 = vunpack.c.l.b16 %v1706
    %v1839 = vunpack.c.l.b16 %v1707
    %v1840 = vunpack.c.l.b16 %v1708
    %v1841 = vunpack.c.l.b16 %v1709
    %v1842 = vunpack.c.l.b16 %v1710
    %v1843 = vunpack.c.l.b16 %v1711
    %v1844 = vunpack.c.l.b16 %v1712
    %v1845 = vpack.c.b16 %v1782, %v1781
    %v1846 = vpack.c.b16 %v1784, %v1783
    %v1847 = vpack.c.b16 %v1786, %v1785
    %v1848 = vpack.c.b16 %v1788, %v1787
    %v1849 = vpack.c.b16 %v1790, %v1789
    %v1850 = vpack.c.b16 %v1792, %v1791
    %v1851 = vpack.c.b16 %v1794, %v1793
    %v1852 = vpack.c.b16 %v1796, %v1795
    %v1853 = vpack.c.b16 %v1798, %v1797
    %v1854 = vpack.c.b16 %v1800, %v1799
    %v1855 = vpack.c.b16 %v1802, %v1801
    %v1856 = vpack.c.b16 %v1804, %v1803
    %v1857 = vpack.c.b16 %v1806, %v1805
    %v1858 = vpack.c.b16 %v1808, %v1807
    %v1859 = vpack.c.b16 %v1810, %v1809
    %v1860 = vpack.c.b16 %v1812, %v1811
    %v1861 = vpack.c.b16 %v1814, %v1813
    %v1862 = vpack.c.b16 %v1816, %v1815
    %v1863 = vpack.c.b16 %v1818, %v1817
    %v1864 = vpack.c.b16 %v1820, %v1819
    %v1865 = vpack.c.b16 %v1822, %v1821
    %v1866 = vpack.c.b16 %v1824, %v1823
    %v1867 = vpack.c.b16 %v1826, %v1825
    %v1868 = vpack.c.b16 %v1828, %v1827
    %v1869 = vpack.c.b16 %v1830, %v1829
    %v1870 = vpack.c.b16 %v1832, %v1831
    %v1871 = vpack.c.b16 %v1834, %v1833
    %v1872 = vpack.c.b16 %v1836, %v1835
    %v1873 = vpack.c.b16 %v1838, %v1837
    %v1874 = vpack.c.b16 %v1840, %v1839
    %v1875 = vpack.c.b16 %v1842, %v1841
    %v1876 = vpack.c.b16 %v1844, %v1843
    %1909 = vmatpush.bf16.msra.mxu0 %v1852
    %1910 = vmatpush.bf16.msra.mxu0 %v1851
    %1911 = vmatpush.bf16.msra.mxu0 %v1850
    %1912 = vmatpush.bf16.msra.mxu0 %v1849
    %1913 = vmatpush.bf16.msra.mxu0 %v1848
    %1914 = vmatpush.bf16.msra.mxu0 %v1847
    %1915 = vmatpush.bf16.msra.mxu0 %v1846
    %1916 = vmatpush.bf16.msra.mxu0 %v1845
    %1917 = vmatmul.bf16.gmra.mxu0 %v1645
    %v1918 = vpop.f32.mrf.mxu0
    %v1919 = vadd.f32 %v1715, %v1918
    %v1920 = vpop.f32.mrf.mxu0
    %v1921 = vadd.f32 %v1715, %v1920
    %1922 = vdwg.mxu0
    %1923 = vmatpush.bf16.msra.mxu0 %v1860
    %1924 = vmatpush.bf16.msra.mxu0 %v1859
    %1925 = vmatpush.bf16.msra.mxu0 %v1858
    %1926 = vmatpush.bf16.msra.mxu0 %v1857
    %1927 = vmatpush.bf16.msra.mxu0 %v1856
    %1928 = vmatpush.bf16.msra.mxu0 %v1855
    %1929 = vmatpush.bf16.msra.mxu0 %v1854
    %1930 = vmatpush.bf16.msra.mxu0 %v1853
    %1931 = vmatmul.bf16.gmra.mxu0 %v1646
    %v1932 = vpop.f32.mrf.mxu0
    %v1933 = vadd.f32 %v1919, %v1932
    %v1934 = vpop.f32.mrf.mxu0
    %v1935 = vadd.f32 %v1921, %v1934
    %1936 = vdwg.mxu0
    %1937 = vmatpush.bf16.msra.mxu0 %v1868
    %1938 = vmatpush.bf16.msra.mxu0 %v1867
    %1939 = vmatpush.bf16.msra.mxu0 %v1866
    %1940 = vmatpush.bf16.msra.mxu0 %v1865
    %1941 = vmatpush.bf16.msra.mxu0 %v1864
    %1942 = vmatpush.bf16.msra.mxu0 %v1863
    %1943 = vmatpush.bf16.msra.mxu0 %v1862
    %1944 = vmatpush.bf16.msra.mxu0 %v1861
    %1945 = vmatmul.bf16.gmra.mxu0 %v1647
    %v1946 = vpop.f32.mrf.mxu0
    %v1947 = vadd.f32 %v1933, %v1946
    %v1948 = vpop.f32.mrf.mxu0
    %v1949 = vadd.f32 %v1935, %v1948
    %1950 = vdwg.mxu0
    %1951 = vmatpush.bf16.msra.mxu0 %v1876
    %1952 = vmatpush.bf16.msra.mxu0 %v1875
    %1953 = vmatpush.bf16.msra.mxu0 %v1874
    %1954 = vmatpush.bf16.msra.mxu0 %v1873
    %1955 = vmatpush.bf16.msra.mxu0 %v1872
    %1956 = vmatpush.bf16.msra.mxu0 %v1871
    %1957 = vmatpush.bf16.msra.mxu0 %v1870
    %1958 = vmatpush.bf16.msra.mxu0 %v1869
    %1959 = vmatmul.bf16.gmra.mxu0 %v1648
    %v1960 = vpop.f32.mrf.mxu0
    %v1961 = vadd.f32 %v1947, %v1960
    %v1962 = vpop.f32.mrf.mxu0
    %v1963 = vadd.f32 %v1949, %v1962
    %1964 = vdwg.mxu0
    %v1965 = vadd.f32 %v1376, %v1961
    %v1966 = vadd.f32 %v1377, %v1963
    %1967 = vadd.xlane.f32.xlu0 %v1965
    %v1968 = vpop.xlane.xlu0 %1967
    %1969 = vadd.xlane.f32.xlu0 %v1966
    %v1970 = vpop.xlane.xlu0 %1969
    %v1971 = vmul.f32 %v1968, %v1329
    %v1972 = vmul.f32 %v1970, %v1329
    %v1973 = vsub.f32 %v1965, %v1971
    %v1974 = vsub.f32 %v1966, %v1972
    %v1975 = vmul.f32 %v1973, %v1973
    %v1976 = vmul.f32 %v1974, %v1974
    %1977 = vadd.xlane.f32.xlu0 %v1975
    %v1978 = vpop.xlane.xlu0 %1977
    %1979 = vadd.xlane.f32.xlu0 %v1976
    %v1980 = vpop.xlane.xlu0 %1979
    %v1981 = vmul.f32 %v1978, %v1329
    %v1982 = vmul.f32 %v1980, %v1329
    %v1983 = vadd.f32 %v1981, 1e-05
    %v1984 = vadd.f32 %v1982, 1e-05
    %v1985 = vrsqrt.pop %v1983
    %v1986 = vmul.f32 %v1985, %v1983
    %v1987 = vmul.f32 %v1986, %v1985
    %v1988 = vmul.f32 0.5, %v1987
    %v1989 = vsub.f32 1.5, %v1988
    %v1990 = vmul.f32 %v1985, %v1989
    %vm1991 = vweird.f32 %v1983
    %vm1992 = vweird.f32 %v1985
    %vm1993 = vmor %vm1991, %vm1992
    %v1994 = vsel %vm1993, %v1985, %v1990
    %v1995 = vrsqrt.pop %v1984
    %v1996 = vmul.f32 %v1995, %v1984
    %v1997 = vmul.f32 %v1996, %v1995
    %v1998 = vmul.f32 0.5, %v1997
    %v1999 = vsub.f32 1.5, %v1998
    %v2000 = vmul.f32 %v1995, %v1999
    %vm2001 = vweird.f32 %v1984
    %vm2002 = vweird.f32 %v1995
    %vm2003 = vmor %vm2001, %vm2002
    %v2004 = vsel %vm2003, %v1995, %v2000
    %v2005 = vmul.f32 %v1973, %v1994
    %v2006 = vmul.f32 %v1974, %v2004
    %v2007 = vld [vmem:[%s12] sm:$0x1]
    %v2009 = vperm.slane %v2007, 0
    %v2011 = vmul.f32 %v2005, %v2009
    %v2012 = vmul.f32 %v2006, %v2009
    %v2013 = vld [vmem:[%s13] sm:$0x1]
    %v2015 = vperm.slane %v2013, 0
    %v2017 = vadd.f32 %v2011, %v2015
    %v2018 = vadd.f32 %v2012, %v2015
    %2019 = vst [vmem:[#allocation15] sm:$0xff] %v2017
    %2020 = vst [vmem:[#allocation15 + $0x8] sm:$0xff] %v2018
    // Predicated region
    $region86: #{tpu_custom_call.1} parent=1 // pred_check
      _
    $region87: #{tpu_custom_call.1} parent=1 // pred_check_branch
      %2022 = sbr.rel (0) target = $region89
    $region88: #{tpu_custom_call.1} parent=1 // pred_region
      %2024 = vsyncadd [#allocation5], 0
      %s2025 = sshll.u32 [#allocation15], 4
      %s2026 = int_to_ptr.vmem [resolvable:$true] %s2025
      %s2027 = sshll.u32 %s14, 4
      %s2028 = int_to_ptr.hbm [resolvable:$true] %s2027
      %2033 = dma.vmem_to_hbm [thread:$0]  %s2026, 256, %s2028, [#allocation5], 128, 128, 8
    $region89: #{tpu_custom_call.1} parent=1 // pred_fallthru
      _
    // Predicated region
    $region90: #{tpu_custom_call.1} parent=1 // pred_check
      _
    $region91: #{tpu_custom_call.1} parent=1 // pred_check_branch
      %2035 = sbr.rel (0) target = $region93
    $region92: #{tpu_custom_call.1} parent=1 // pred_region
      %2037 = dma.done [#allocation5], 256
    $region93: #{tpu_custom_call.1} parent=1 // pred_fallthru
      _
    %2038 = vsyncpa [#allocation4], 1
    %2039 = vsyncpa [#allocation7], 1
    %2040 = vsyncpa [#allocation10], 1
    %2041 = vsyncpa [#allocation13], 1
    %2042 = vsyncpa [#allocation5], 1

</llo_original>
